<compile_context>
chip_gen: v6e
topology: v6e:2x2x1
jax: 0.10.0
libtpu: 0.0.40
codegen_flags: <defaults>
</compile_context>

<pallas_src>
import jax
import jax.numpy as jnp
from jax import lax
from jax.experimental import pallas as pl
from jax.experimental.pallas import tpu as pltpu


def _make_conv_kernel(H, W, K, pad, dil, groups, cin_g, co_g, has_bias):
    HW = H * W
    taps = [(kh, kw) for kh in range(K) for kw in range(K)]

    def kernel(*refs):
        if has_bias:
            x_ref, w_ref, b_ref, o_ref = refs
        else:
            x_ref, w_ref, o_ref = refs
            b_ref = None

        x = x_ref[0].astype(jnp.float32)                     # (Cin, H*W)

        # Flattened-position row/col ids, hoisted out of the tap loop.
        q = lax.broadcasted_iota(jnp.int32, (1, HW), 1)
        if W & (W - 1) == 0:                                 # power-of-two W
            row = q >> (W.bit_length() - 1)
            col = q & (W - 1)
        else:
            # TODO(synk): verify vector int division lowering for non-pow2 W.
            row = q // W
            col = q - row * W

        accs = [jnp.zeros((co_g, HW), jnp.float32) for _ in range(groups)]

        for t, (kh, kw) in enumerate(taps):
            dh = kh * dil - pad
            dw = kw * dil - pad
            shift = dh * W + dw
            # shifted[q] = x[q + shift]; wrapped / out-of-image values are
            # zeroed by the mask below (this implements the zero padding).
            shifted = x if shift % HW == 0 else jnp.roll(x, -shift, axis=-1)
            valid = ((row + dh >= 0) & (row + dh < H) &
                     (col + dw >= 0) & (col + dw < W))
            xs = jnp.where(valid, shifted, 0.0)              # (Cin, H*W)

            w_t = w_ref[t].astype(jnp.float32)               # (Cout, Cin/g)
            for g in range(groups):
                xg = xs[g * cin_g:(g + 1) * cin_g]           # (Cin/g, HW)
                wg = w_t[g * co_g:(g + 1) * co_g]            # (Cout/g, Cin/g)
                if cin_g >= 32:
                    # Large contraction: use the MXU.
                    accs[g] = accs[g] + jnp.dot(
                        wg, xg, preferred_element_type=jnp.float32)
                else:
                    # Tiny contraction (e.g. Cin=4): broadcast-MAC on the VPU
                    # (an MXU matmul with K=4 would be ~3% utilised).
                    for ci in range(cin_g):
                        accs[g] = accs[g] + wg[:, ci:ci + 1] * xg[ci:ci + 1, :]

        out = accs[0] if groups == 1 else jnp.concatenate(accs, axis=0)
        if has_bias:
            out = out + b_ref[...].astype(jnp.float32)       # (Cout, 1)
        o_ref[0] = out.astype(o_ref.dtype)                   # lane-dense store

    return kernel


def conv2d_forward(x, weight, bias=None, *, stride=1, padding=0, dilation=1,
                   groups=1):
    """Pallas equivalent of F.conv2d(x, weight, bias, stride, padding, dilation, groups)."""
    N, Cin, H, W = x.shape
    CO, cin_g, K, K2 = weight.shape
    assert K == K2, "only square kernels are supported"
    assert cin_g * groups == Cin and CO % groups == 0
    co_g = CO // groups
    HW = H * W

    # stride-1 output extent; the kernel computes the dense map on the input
    # grid, which is then cropped (and subsampled for stride>1).
    H1 = H + 2 * padding - dilation * (K - 1)
    W1 = W + 2 * padding - dilation * (K - 1)
    assert 0 < H1 <= H and 0 < W1 <= W, \
        "padding > dilation*(kernel_size-1)/2 is not supported"
    Hout = (H1 - 1) // stride + 1
    Wout = (W1 - 1) // stride + 1

    # Cheap layout prep only: contiguous reshape of x (free, no HBM pass) and
    # a tiny weight rearrangement to tap-major (K*K, Cout, Cin/g).
    x_flat = x.reshape(N, Cin, HW)
    w_taps = jnp.transpose(weight.reshape(CO, cin_g, K * K), (2, 0, 1))
    has_bias = bias is not None

    kernel = _make_conv_kernel(H, W, K, padding, dilation, groups,
                               cin_g, co_g, has_bias)

    in_specs = [
        pl.BlockSpec((1, Cin, HW), lambda n: (n, 0, 0)),
        pl.BlockSpec((K * K, CO, cin_g), lambda n: (0, 0, 0)),
    ]
    args = [x_flat, w_taps]
    if has_bias:
        in_specs.append(pl.BlockSpec((CO, 1), lambda n: (0, 0)))
        args.append(bias.reshape(CO, 1).astype(x.dtype))

    y_flat = pl.pallas_call(
        kernel,
        out_shape=jax.ShapeDtypeStruct((N, CO, HW), x.dtype),
        grid_spec=pltpu.PrefetchScalarGridSpec(
            num_scalar_prefetch=0,
            grid=(N,),
            in_specs=in_specs,
            out_specs=pl.BlockSpec((1, CO, HW), lambda n: (n, 0, 0)),
        ),
        compiler_params=pltpu.CompilerParams(
            dimension_semantics=("parallel",)),
    )(*args)

    y = y_flat.reshape(N, CO, H, W)
    if (H1, W1) != (H, W):
        y = y[:, :, :H1, :W1]
    if stride > 1:
        # TODO(synk): move strided output selection inside the kernel (compute
        # only the needed rows/cols) instead of subsampling the dense output.
        y = y[:, :, ::stride, ::stride]
    assert y.shape == (N, CO, Hout, Wout)
    return y


class Conv2dTest:
    """JAX/Pallas port of the PyTorch Conv2d_test module (same weight init)."""

    def __init__(self, in_planes, out_planes, kernel_size, stride=1,
                 padding=0, dilation=1, groups=1, bias=False):
        assert in_planes % groups == 0
        w = jnp.zeros((out_planes, in_planes // groups, kernel_size,
                       kernel_size), jnp.float32)
        w = w.at[2:, :, :, :].set(1.0)        # matches the PyTorch init
        self.weight = w
        self.bias = jnp.zeros((out_planes,), jnp.float32) if bias else None
        self.stride = stride
        self.padding = padding
        self.dilation = dilation
        self.groups = groups

    def __call__(self, x):
        return conv2d_forward(x, self.weight, self.bias,
                              stride=self.stride, padding=self.padding,
                              dilation=self.dilation, groups=self.groups)


if __name__ == "__main__":
    key = jax.random.PRNGKey(0)
    N, C_IN, C_OUT, H, W = 2, 4, 8, 16, 16

    module = Conv2dTest(in_planes=C_IN, out_planes=C_OUT, kernel_size=3,
                        stride=1, padding=1, groups=1, bias=False)

    kx, kw = jax.random.split(key)
    x = jax.random.normal(kx, (N, C_IN, H, W), jnp.float32)

    out = module(x)
    out = jax.block_until_ready(out)
    assert out.shape == (N, C_OUT, H, W)

    # Correctness check vs XLA's conv (module weight + an extra random weight).
    def ref_conv(x_, w_):
        return lax.conv_general_dilated(
            x_, w_, window_strides=(1, 1), padding=((1, 1), (1, 1)),
            dimension_numbers=("NCHW", "OIHW", "NCHW"),
            feature_group_count=1, precision=lax.Precision.HIGHEST)

    assert jnp.allclose(out, ref_conv(x, module.weight), atol=1e-4, rtol=1e-4)

    w_rand = 0.1 * jax.random.normal(kw, (C_OUT, C_IN, 3, 3), jnp.float32)
    out_rand = conv2d_forward(x, w_rand, None, stride=1, padding=1)
    out_rand = jax.block_until_ready(out_rand)
    assert jnp.allclose(out_rand, ref_conv(x, w_rand), atol=1e-4, rtol=1e-4)

    print("KERNEL_OK")
</pallas_src>

<mosaic_0001>
module attributes {stable_mosaic.version = 11 : i64} {
  func.func @kernel(%arg0: i32, %arg1: memref<1x4x256xf32, #tpu.memory_space<vmem>>, %arg2: memref<9x8x4xf32, #tpu.memory_space<vmem>>, %arg3: memref<1x8x256xf32, #tpu.memory_space<vmem>>) attributes {dimension_semantics = [#tpu.dimension_semantics<parallel>], iteration_bounds = array<i64: 2>, scalar_prefetch = 0 : i64, scratch_operands = 0 : i64, tpu.core_type = #tpu.core_type<tc>, window_params = [{transform_indices = @transform_0, window_bounds = array<i64: 1, 4, 256>}, {pipeline_mode = #tpu.pipeline_mode<synchronous>, transform_indices = @transform_1, window_bounds = array<i64: 9, 8, 4>}, {transform_indices = @transform_2, window_bounds = array<i64: 1, 8, 256>}]} {
    %c0 = arith.constant 0 : index
    %c0_0 = arith.constant 0 : index
    %c0_1 = arith.constant 0 : index
    %0 = vector.load %arg1[%c0, %c0_0, %c0_1] : memref<1x4x256xf32, #tpu.memory_space<vmem>>, vector<1x4x256xf32>
    %1 = vector.shape_cast %0 : vector<1x4x256xf32> to vector<4x256xf32>
    %2 = tpu.iota {dimensions = array<i32: 1>} : vector<1x256xi32>
    %c4_i32 = arith.constant 4 : i32
    %3 = vector.broadcast %c4_i32 : i32 to vector<1x256xi32>
    %4 = arith.shrsi %2, %3 : vector<1x256xi32>
    %c15_i32 = arith.constant 15 : i32
    %5 = vector.broadcast %c15_i32 : i32 to vector<1x256xi32>
    %6 = arith.andi %2, %5 : vector<1x256xi32>
    %cst = arith.constant 0.000000e+00 : f32
    %7 = vector.broadcast %cst : f32 to vector<8x256xf32>
    %8 = vector.extract_strided_slice %1 {offsets = [0, 239], sizes = [4, 17], strides = [1, 1]} : vector<4x256xf32> to vector<4x17xf32>
    %9 = vector.extract_strided_slice %1 {offsets = [0, 0], sizes = [4, 239], strides = [1, 1]} : vector<4x256xf32> to vector<4x239xf32>
    %10 = tpu.concatenate %8, %9 in 1 : vector<4x17xf32>, vector<4x239xf32> -> vector<4x256xf32>
    %c-1_i32 = arith.constant -1 : i32
    %11 = vector.broadcast %c-1_i32 : i32 to vector<1x256xi32>
    %12 = arith.addi %4, %11 : vector<1x256xi32>
    %c0_i32 = arith.constant 0 : i32
    %13 = vector.broadcast %c0_i32 : i32 to vector<1x256xi32>
    %14 = arith.cmpi sge, %12, %13 : vector<1x256xi32>
    %c-1_i32_2 = arith.constant -1 : i32
    %15 = vector.broadcast %c-1_i32_2 : i32 to vector<1x256xi32>
    %16 = arith.addi %4, %15 : vector<1x256xi32>
    %c16_i32 = arith.constant 16 : i32
    %17 = vector.broadcast %c16_i32 : i32 to vector<1x256xi32>
    %18 = arith.cmpi slt, %16, %17 : vector<1x256xi32>
    %19 = arith.andi %14, %18 : vector<1x256xi1>
    %c-1_i32_3 = arith.constant -1 : i32
    %20 = vector.broadcast %c-1_i32_3 : i32 to vector<1x256xi32>
    %21 = arith.addi %6, %20 : vector<1x256xi32>
    %c0_i32_4 = arith.constant 0 : i32
    %22 = vector.broadcast %c0_i32_4 : i32 to vector<1x256xi32>
    %23 = arith.cmpi sge, %21, %22 : vector<1x256xi32>
    %24 = arith.andi %19, %23 : vector<1x256xi1>
    %c-1_i32_5 = arith.constant -1 : i32
    %25 = vector.broadcast %c-1_i32_5 : i32 to vector<1x256xi32>
    %26 = arith.addi %6, %25 : vector<1x256xi32>
    %c16_i32_6 = arith.constant 16 : i32
    %27 = vector.broadcast %c16_i32_6 : i32 to vector<1x256xi32>
    %28 = arith.cmpi slt, %26, %27 : vector<1x256xi32>
    %29 = arith.andi %24, %28 : vector<1x256xi1>
    %cst_7 = arith.constant 0.000000e+00 : f32
    %30 = vector.shape_cast %29 : vector<1x256xi1> to vector<1x256xi1>
    %31 = vector.broadcast %30 : vector<1x256xi1> to vector<4x256xi1>
    %32 = vector.broadcast %cst_7 : f32 to vector<4x256xf32>
    %33 = arith.select %31, %10, %32 : vector<4x256xi1>, vector<4x256xf32>
    %c0_8 = arith.constant 0 : index
    %c0_9 = arith.constant 0 : index
    %c0_10 = arith.constant 0 : index
    %34 = vector.load %arg2[%c0_8, %c0_9, %c0_10] : memref<9x8x4xf32, #tpu.memory_space<vmem>>, vector<1x8x4xf32>
    %35 = vector.shape_cast %34 : vector<1x8x4xf32> to vector<8x4xf32>
    %36 = vector.extract_strided_slice %35 {offsets = [0, 0], sizes = [8, 1], strides = [1, 1]} : vector<8x4xf32> to vector<8x1xf32>
    %37 = vector.extract_strided_slice %33 {offsets = [0, 0], sizes = [1, 256], strides = [1, 1]} : vector<4x256xf32> to vector<1x256xf32>
    %38 = vector.broadcast %36 : vector<8x1xf32> to vector<8x256xf32>
    %39 = vector.broadcast %37 : vector<1x256xf32> to vector<8x256xf32>
    %40 = arith.mulf %38, %39 : vector<8x256xf32>
    %41 = arith.addf %7, %40 : vector<8x256xf32>
    %42 = vector.extract_strided_slice %35 {offsets = [0, 1], sizes = [8, 1], strides = [1, 1]} : vector<8x4xf32> to vector<8x1xf32>
    %43 = vector.extract_strided_slice %33 {offsets = [1, 0], sizes = [1, 256], strides = [1, 1]} : vector<4x256xf32> to vector<1x256xf32>
    %44 = vector.broadcast %42 : vector<8x1xf32> to vector<8x256xf32>
    %45 = vector.broadcast %43 : vector<1x256xf32> to vector<8x256xf32>
    %46 = arith.mulf %44, %45 : vector<8x256xf32>
    %47 = arith.addf %41, %46 : vector<8x256xf32>
    %48 = vector.extract_strided_slice %35 {offsets = [0, 2], sizes = [8, 1], strides = [1, 1]} : vector<8x4xf32> to vector<8x1xf32>
    %49 = vector.extract_strided_slice %33 {offsets = [2, 0], sizes = [1, 256], strides = [1, 1]} : vector<4x256xf32> to vector<1x256xf32>
    %50 = vector.broadcast %48 : vector<8x1xf32> to vector<8x256xf32>
    %51 = vector.broadcast %49 : vector<1x256xf32> to vector<8x256xf32>
    %52 = arith.mulf %50, %51 : vector<8x256xf32>
    %53 = arith.addf %47, %52 : vector<8x256xf32>
    %54 = vector.extract_strided_slice %35 {offsets = [0, 3], sizes = [8, 1], strides = [1, 1]} : vector<8x4xf32> to vector<8x1xf32>
    %55 = vector.extract_strided_slice %33 {offsets = [3, 0], sizes = [1, 256], strides = [1, 1]} : vector<4x256xf32> to vector<1x256xf32>
    %56 = vector.broadcast %54 : vector<8x1xf32> to vector<8x256xf32>
    %57 = vector.broadcast %55 : vector<1x256xf32> to vector<8x256xf32>
    %58 = arith.mulf %56, %57 : vector<8x256xf32>
    %59 = arith.addf %53, %58 : vector<8x256xf32>
    %60 = vector.extract_strided_slice %1 {offsets = [0, 240], sizes = [4, 16], strides = [1, 1]} : vector<4x256xf32> to vector<4x16xf32>
    %61 = vector.extract_strided_slice %1 {offsets = [0, 0], sizes = [4, 240], strides = [1, 1]} : vector<4x256xf32> to vector<4x240xf32>
    %62 = tpu.concatenate %60, %61 in 1 : vector<4x16xf32>, vector<4x240xf32> -> vector<4x256xf32>
    %c-1_i32_11 = arith.constant -1 : i32
    %63 = vector.broadcast %c-1_i32_11 : i32 to vector<1x256xi32>
    %64 = arith.addi %4, %63 : vector<1x256xi32>
    %c0_i32_12 = arith.constant 0 : i32
    %65 = vector.broadcast %c0_i32_12 : i32 to vector<1x256xi32>
    %66 = arith.cmpi sge, %64, %65 : vector<1x256xi32>
    %c-1_i32_13 = arith.constant -1 : i32
    %67 = vector.broadcast %c-1_i32_13 : i32 to vector<1x256xi32>
    %68 = arith.addi %4, %67 : vector<1x256xi32>
    %c16_i32_14 = arith.constant 16 : i32
    %69 = vector.broadcast %c16_i32_14 : i32 to vector<1x256xi32>
    %70 = arith.cmpi slt, %68, %69 : vector<1x256xi32>
    %71 = arith.andi %66, %70 : vector<1x256xi1>
    %c0_i32_15 = arith.constant 0 : i32
    %72 = vector.broadcast %c0_i32_15 : i32 to vector<1x256xi32>
    %73 = arith.addi %6, %72 : vector<1x256xi32>
    %c0_i32_16 = arith.constant 0 : i32
    %74 = vector.broadcast %c0_i32_16 : i32 to vector<1x256xi32>
    %75 = arith.cmpi sge, %73, %74 : vector<1x256xi32>
    %76 = arith.andi %71, %75 : vector<1x256xi1>
    %c0_i32_17 = arith.constant 0 : i32
    %77 = vector.broadcast %c0_i32_17 : i32 to vector<1x256xi32>
    %78 = arith.addi %6, %77 : vector<1x256xi32>
    %c16_i32_18 = arith.constant 16 : i32
    %79 = vector.broadcast %c16_i32_18 : i32 to vector<1x256xi32>
    %80 = arith.cmpi slt, %78, %79 : vector<1x256xi32>
    %81 = arith.andi %76, %80 : vector<1x256xi1>
    %cst_19 = arith.constant 0.000000e+00 : f32
    %82 = vector.shape_cast %81 : vector<1x256xi1> to vector<1x256xi1>
    %83 = vector.broadcast %82 : vector<1x256xi1> to vector<4x256xi1>
    %84 = vector.broadcast %cst_19 : f32 to vector<4x256xf32>
    %85 = arith.select %83, %62, %84 : vector<4x256xi1>, vector<4x256xf32>
    %c1 = arith.constant 1 : index
    %c0_20 = arith.constant 0 : index
    %c0_21 = arith.constant 0 : index
    %86 = vector.load %arg2[%c1, %c0_20, %c0_21] : memref<9x8x4xf32, #tpu.memory_space<vmem>>, vector<1x8x4xf32>
    %87 = vector.shape_cast %86 : vector<1x8x4xf32> to vector<8x4xf32>
    %88 = vector.extract_strided_slice %87 {offsets = [0, 0], sizes = [8, 1], strides = [1, 1]} : vector<8x4xf32> to vector<8x1xf32>
    %89 = vector.extract_strided_slice %85 {offsets = [0, 0], sizes = [1, 256], strides = [1, 1]} : vector<4x256xf32> to vector<1x256xf32>
    %90 = vector.broadcast %88 : vector<8x1xf32> to vector<8x256xf32>
    %91 = vector.broadcast %89 : vector<1x256xf32> to vector<8x256xf32>
    %92 = arith.mulf %90, %91 : vector<8x256xf32>
    %93 = arith.addf %59, %92 : vector<8x256xf32>
    %94 = vector.extract_strided_slice %87 {offsets = [0, 1], sizes = [8, 1], strides = [1, 1]} : vector<8x4xf32> to vector<8x1xf32>
    %95 = vector.extract_strided_slice %85 {offsets = [1, 0], sizes = [1, 256], strides = [1, 1]} : vector<4x256xf32> to vector<1x256xf32>
    %96 = vector.broadcast %94 : vector<8x1xf32> to vector<8x256xf32>
    %97 = vector.broadcast %95 : vector<1x256xf32> to vector<8x256xf32>
    %98 = arith.mulf %96, %97 : vector<8x256xf32>
    %99 = arith.addf %93, %98 : vector<8x256xf32>
    %100 = vector.extract_strided_slice %87 {offsets = [0, 2], sizes = [8, 1], strides = [1, 1]} : vector<8x4xf32> to vector<8x1xf32>
    %101 = vector.extract_strided_slice %85 {offsets = [2, 0], sizes = [1, 256], strides = [1, 1]} : vector<4x256xf32> to vector<1x256xf32>
    %102 = vector.broadcast %100 : vector<8x1xf32> to vector<8x256xf32>
    %103 = vector.broadcast %101 : vector<1x256xf32> to vector<8x256xf32>
    %104 = arith.mulf %102, %103 : vector<8x256xf32>
    %105 = arith.addf %99, %104 : vector<8x256xf32>
    %106 = vector.extract_strided_slice %87 {offsets = [0, 3], sizes = [8, 1], strides = [1, 1]} : vector<8x4xf32> to vector<8x1xf32>
    %107 = vector.extract_strided_slice %85 {offsets = [3, 0], sizes = [1, 256], strides = [1, 1]} : vector<4x256xf32> to vector<1x256xf32>
    %108 = vector.broadcast %106 : vector<8x1xf32> to vector<8x256xf32>
    %109 = vector.broadcast %107 : vector<1x256xf32> to vector<8x256xf32>
    %110 = arith.mulf %108, %109 : vector<8x256xf32>
    %111 = arith.addf %105, %110 : vector<8x256xf32>
    %112 = vector.extract_strided_slice %1 {offsets = [0, 241], sizes = [4, 15], strides = [1, 1]} : vector<4x256xf32> to vector<4x15xf32>
    %113 = vector.extract_strided_slice %1 {offsets = [0, 0], sizes = [4, 241], strides = [1, 1]} : vector<4x256xf32> to vector<4x241xf32>
    %114 = tpu.concatenate %112, %113 in 1 : vector<4x15xf32>, vector<4x241xf32> -> vector<4x256xf32>
    %c-1_i32_22 = arith.constant -1 : i32
    %115 = vector.broadcast %c-1_i32_22 : i32 to vector<1x256xi32>
    %116 = arith.addi %4, %115 : vector<1x256xi32>
    %c0_i32_23 = arith.constant 0 : i32
    %117 = vector.broadcast %c0_i32_23 : i32 to vector<1x256xi32>
    %118 = arith.cmpi sge, %116, %117 : vector<1x256xi32>
    %c-1_i32_24 = arith.constant -1 : i32
    %119 = vector.broadcast %c-1_i32_24 : i32 to vector<1x256xi32>
    %120 = arith.addi %4, %119 : vector<1x256xi32>
    %c16_i32_25 = arith.constant 16 : i32
    %121 = vector.broadcast %c16_i32_25 : i32 to vector<1x256xi32>
    %122 = arith.cmpi slt, %120, %121 : vector<1x256xi32>
    %123 = arith.andi %118, %122 : vector<1x256xi1>
    %c1_i32 = arith.constant 1 : i32
    %124 = vector.broadcast %c1_i32 : i32 to vector<1x256xi32>
    %125 = arith.addi %6, %124 : vector<1x256xi32>
    %c0_i32_26 = arith.constant 0 : i32
    %126 = vector.broadcast %c0_i32_26 : i32 to vector<1x256xi32>
    %127 = arith.cmpi sge, %125, %126 : vector<1x256xi32>
    %128 = arith.andi %123, %127 : vector<1x256xi1>
    %c1_i32_27 = arith.constant 1 : i32
    %129 = vector.broadcast %c1_i32_27 : i32 to vector<1x256xi32>
    %130 = arith.addi %6, %129 : vector<1x256xi32>
    %c16_i32_28 = arith.constant 16 : i32
    %131 = vector.broadcast %c16_i32_28 : i32 to vector<1x256xi32>
    %132 = arith.cmpi slt, %130, %131 : vector<1x256xi32>
    %133 = arith.andi %128, %132 : vector<1x256xi1>
    %cst_29 = arith.constant 0.000000e+00 : f32
    %134 = vector.shape_cast %133 : vector<1x256xi1> to vector<1x256xi1>
    %135 = vector.broadcast %134 : vector<1x256xi1> to vector<4x256xi1>
    %136 = vector.broadcast %cst_29 : f32 to vector<4x256xf32>
    %137 = arith.select %135, %114, %136 : vector<4x256xi1>, vector<4x256xf32>
    %c2 = arith.constant 2 : index
    %c0_30 = arith.constant 0 : index
    %c0_31 = arith.constant 0 : index
    %138 = vector.load %arg2[%c2, %c0_30, %c0_31] : memref<9x8x4xf32, #tpu.memory_space<vmem>>, vector<1x8x4xf32>
    %139 = vector.shape_cast %138 : vector<1x8x4xf32> to vector<8x4xf32>
    %140 = vector.extract_strided_slice %139 {offsets = [0, 0], sizes = [8, 1], strides = [1, 1]} : vector<8x4xf32> to vector<8x1xf32>
    %141 = vector.extract_strided_slice %137 {offsets = [0, 0], sizes = [1, 256], strides = [1, 1]} : vector<4x256xf32> to vector<1x256xf32>
    %142 = vector.broadcast %140 : vector<8x1xf32> to vector<8x256xf32>
    %143 = vector.broadcast %141 : vector<1x256xf32> to vector<8x256xf32>
    %144 = arith.mulf %142, %143 : vector<8x256xf32>
    %145 = arith.addf %111, %144 : vector<8x256xf32>
    %146 = vector.extract_strided_slice %139 {offsets = [0, 1], sizes = [8, 1], strides = [1, 1]} : vector<8x4xf32> to vector<8x1xf32>
    %147 = vector.extract_strided_slice %137 {offsets = [1, 0], sizes = [1, 256], strides = [1, 1]} : vector<4x256xf32> to vector<1x256xf32>
    %148 = vector.broadcast %146 : vector<8x1xf32> to vector<8x256xf32>
    %149 = vector.broadcast %147 : vector<1x256xf32> to vector<8x256xf32>
    %150 = arith.mulf %148, %149 : vector<8x256xf32>
    %151 = arith.addf %145, %150 : vector<8x256xf32>
    %152 = vector.extract_strided_slice %139 {offsets = [0, 2], sizes = [8, 1], strides = [1, 1]} : vector<8x4xf32> to vector<8x1xf32>
    %153 = vector.extract_strided_slice %137 {offsets = [2, 0], sizes = [1, 256], strides = [1, 1]} : vector<4x256xf32> to vector<1x256xf32>
    %154 = vector.broadcast %152 : vector<8x1xf32> to vector<8x256xf32>
    %155 = vector.broadcast %153 : vector<1x256xf32> to vector<8x256xf32>
    %156 = arith.mulf %154, %155 : vector<8x256xf32>
    %157 = arith.addf %151, %156 : vector<8x256xf32>
    %158 = vector.extract_strided_slice %139 {offsets = [0, 3], sizes = [8, 1], strides = [1, 1]} : vector<8x4xf32> to vector<8x1xf32>
    %159 = vector.extract_strided_slice %137 {offsets = [3, 0], sizes = [1, 256], strides = [1, 1]} : vector<4x256xf32> to vector<1x256xf32>
    %160 = vector.broadcast %158 : vector<8x1xf32> to vector<8x256xf32>
    %161 = vector.broadcast %159 : vector<1x256xf32> to vector<8x256xf32>
    %162 = arith.mulf %160, %161 : vector<8x256xf32>
    %163 = arith.addf %157, %162 : vector<8x256xf32>
    %164 = vector.extract_strided_slice %1 {offsets = [0, 255], sizes = [4, 1], strides = [1, 1]} : vector<4x256xf32> to vector<4x1xf32>
    %165 = vector.extract_strided_slice %1 {offsets = [0, 0], sizes = [4, 255], strides = [1, 1]} : vector<4x256xf32> to vector<4x255xf32>
    %166 = tpu.concatenate %164, %165 in 1 : vector<4x1xf32>, vector<4x255xf32> -> vector<4x256xf32>
    %c0_i32_32 = arith.constant 0 : i32
    %167 = vector.broadcast %c0_i32_32 : i32 to vector<1x256xi32>
    %168 = arith.addi %4, %167 : vector<1x256xi32>
    %c0_i32_33 = arith.constant 0 : i32
    %169 = vector.broadcast %c0_i32_33 : i32 to vector<1x256xi32>
    %170 = arith.cmpi sge, %168, %169 : vector<1x256xi32>
    %c0_i32_34 = arith.constant 0 : i32
    %171 = vector.broadcast %c0_i32_34 : i32 to vector<1x256xi32>
    %172 = arith.addi %4, %171 : vector<1x256xi32>
    %c16_i32_35 = arith.constant 16 : i32
    %173 = vector.broadcast %c16_i32_35 : i32 to vector<1x256xi32>
    %174 = arith.cmpi slt, %172, %173 : vector<1x256xi32>
    %175 = arith.andi %170, %174 : vector<1x256xi1>
    %c-1_i32_36 = arith.constant -1 : i32
    %176 = vector.broadcast %c-1_i32_36 : i32 to vector<1x256xi32>
    %177 = arith.addi %6, %176 : vector<1x256xi32>
    %c0_i32_37 = arith.constant 0 : i32
    %178 = vector.broadcast %c0_i32_37 : i32 to vector<1x256xi32>
    %179 = arith.cmpi sge, %177, %178 : vector<1x256xi32>
    %180 = arith.andi %175, %179 : vector<1x256xi1>
    %c-1_i32_38 = arith.constant -1 : i32
    %181 = vector.broadcast %c-1_i32_38 : i32 to vector<1x256xi32>
    %182 = arith.addi %6, %181 : vector<1x256xi32>
    %c16_i32_39 = arith.constant 16 : i32
    %183 = vector.broadcast %c16_i32_39 : i32 to vector<1x256xi32>
    %184 = arith.cmpi slt, %182, %183 : vector<1x256xi32>
    %185 = arith.andi %180, %184 : vector<1x256xi1>
    %cst_40 = arith.constant 0.000000e+00 : f32
    %186 = vector.shape_cast %185 : vector<1x256xi1> to vector<1x256xi1>
    %187 = vector.broadcast %186 : vector<1x256xi1> to vector<4x256xi1>
    %188 = vector.broadcast %cst_40 : f32 to vector<4x256xf32>
    %189 = arith.select %187, %166, %188 : vector<4x256xi1>, vector<4x256xf32>
    %c3 = arith.constant 3 : index
    %c0_41 = arith.constant 0 : index
    %c0_42 = arith.constant 0 : index
    %190 = vector.load %arg2[%c3, %c0_41, %c0_42] : memref<9x8x4xf32, #tpu.memory_space<vmem>>, vector<1x8x4xf32>
    %191 = vector.shape_cast %190 : vector<1x8x4xf32> to vector<8x4xf32>
    %192 = vector.extract_strided_slice %191 {offsets = [0, 0], sizes = [8, 1], strides = [1, 1]} : vector<8x4xf32> to vector<8x1xf32>
    %193 = vector.extract_strided_slice %189 {offsets = [0, 0], sizes = [1, 256], strides = [1, 1]} : vector<4x256xf32> to vector<1x256xf32>
    %194 = vector.broadcast %192 : vector<8x1xf32> to vector<8x256xf32>
    %195 = vector.broadcast %193 : vector<1x256xf32> to vector<8x256xf32>
    %196 = arith.mulf %194, %195 : vector<8x256xf32>
    %197 = arith.addf %163, %196 : vector<8x256xf32>
    %198 = vector.extract_strided_slice %191 {offsets = [0, 1], sizes = [8, 1], strides = [1, 1]} : vector<8x4xf32> to vector<8x1xf32>
    %199 = vector.extract_strided_slice %189 {offsets = [1, 0], sizes = [1, 256], strides = [1, 1]} : vector<4x256xf32> to vector<1x256xf32>
    %200 = vector.broadcast %198 : vector<8x1xf32> to vector<8x256xf32>
    %201 = vector.broadcast %199 : vector<1x256xf32> to vector<8x256xf32>
    %202 = arith.mulf %200, %201 : vector<8x256xf32>
    %203 = arith.addf %197, %202 : vector<8x256xf32>
    %204 = vector.extract_strided_slice %191 {offsets = [0, 2], sizes = [8, 1], strides = [1, 1]} : vector<8x4xf32> to vector<8x1xf32>
    %205 = vector.extract_strided_slice %189 {offsets = [2, 0], sizes = [1, 256], strides = [1, 1]} : vector<4x256xf32> to vector<1x256xf32>
    %206 = vector.broadcast %204 : vector<8x1xf32> to vector<8x256xf32>
    %207 = vector.broadcast %205 : vector<1x256xf32> to vector<8x256xf32>
    %208 = arith.mulf %206, %207 : vector<8x256xf32>
    %209 = arith.addf %203, %208 : vector<8x256xf32>
    %210 = vector.extract_strided_slice %191 {offsets = [0, 3], sizes = [8, 1], strides = [1, 1]} : vector<8x4xf32> to vector<8x1xf32>
    %211 = vector.extract_strided_slice %189 {offsets = [3, 0], sizes = [1, 256], strides = [1, 1]} : vector<4x256xf32> to vector<1x256xf32>
    %212 = vector.broadcast %210 : vector<8x1xf32> to vector<8x256xf32>
    %213 = vector.broadcast %211 : vector<1x256xf32> to vector<8x256xf32>
    %214 = arith.mulf %212, %213 : vector<8x256xf32>
    %215 = arith.addf %209, %214 : vector<8x256xf32>
    %c0_i32_43 = arith.constant 0 : i32
    %216 = vector.broadcast %c0_i32_43 : i32 to vector<1x256xi32>
    %217 = arith.addi %4, %216 : vector<1x256xi32>
    %c0_i32_44 = arith.constant 0 : i32
    %218 = vector.broadcast %c0_i32_44 : i32 to vector<1x256xi32>
    %219 = arith.cmpi sge, %217, %218 : vector<1x256xi32>
    %c0_i32_45 = arith.constant 0 : i32
    %220 = vector.broadcast %c0_i32_45 : i32 to vector<1x256xi32>
    %221 = arith.addi %4, %220 : vector<1x256xi32>
    %c16_i32_46 = arith.constant 16 : i32
    %222 = vector.broadcast %c16_i32_46 : i32 to vector<1x256xi32>
    %223 = arith.cmpi slt, %221, %222 : vector<1x256xi32>
    %224 = arith.andi %219, %223 : vector<1x256xi1>
    %c0_i32_47 = arith.constant 0 : i32
    %225 = vector.broadcast %c0_i32_47 : i32 to vector<1x256xi32>
    %226 = arith.addi %6, %225 : vector<1x256xi32>
    %c0_i32_48 = arith.constant 0 : i32
    %227 = vector.broadcast %c0_i32_48 : i32 to vector<1x256xi32>
    %228 = arith.cmpi sge, %226, %227 : vector<1x256xi32>
    %229 = arith.andi %224, %228 : vector<1x256xi1>
    %c0_i32_49 = arith.constant 0 : i32
    %230 = vector.broadcast %c0_i32_49 : i32 to vector<1x256xi32>
    %231 = arith.addi %6, %230 : vector<1x256xi32>
    %c16_i32_50 = arith.constant 16 : i32
    %232 = vector.broadcast %c16_i32_50 : i32 to vector<1x256xi32>
    %233 = arith.cmpi slt, %231, %232 : vector<1x256xi32>
    %234 = arith.andi %229, %233 : vector<1x256xi1>
    %cst_51 = arith.constant 0.000000e+00 : f32
    %235 = vector.shape_cast %234 : vector<1x256xi1> to vector<1x256xi1>
    %236 = vector.broadcast %235 : vector<1x256xi1> to vector<4x256xi1>
    %237 = vector.broadcast %cst_51 : f32 to vector<4x256xf32>
    %238 = arith.select %236, %1, %237 : vector<4x256xi1>, vector<4x256xf32>
    %c4 = arith.constant 4 : index
    %c0_52 = arith.constant 0 : index
    %c0_53 = arith.constant 0 : index
    %239 = vector.load %arg2[%c4, %c0_52, %c0_53] : memref<9x8x4xf32, #tpu.memory_space<vmem>>, vector<1x8x4xf32>
    %240 = vector.shape_cast %239 : vector<1x8x4xf32> to vector<8x4xf32>
    %241 = vector.extract_strided_slice %240 {offsets = [0, 0], sizes = [8, 1], strides = [1, 1]} : vector<8x4xf32> to vector<8x1xf32>
    %242 = vector.extract_strided_slice %238 {offsets = [0, 0], sizes = [1, 256], strides = [1, 1]} : vector<4x256xf32> to vector<1x256xf32>
    %243 = vector.broadcast %241 : vector<8x1xf32> to vector<8x256xf32>
    %244 = vector.broadcast %242 : vector<1x256xf32> to vector<8x256xf32>
    %245 = arith.mulf %243, %244 : vector<8x256xf32>
    %246 = arith.addf %215, %245 : vector<8x256xf32>
    %247 = vector.extract_strided_slice %240 {offsets = [0, 1], sizes = [8, 1], strides = [1, 1]} : vector<8x4xf32> to vector<8x1xf32>
    %248 = vector.extract_strided_slice %238 {offsets = [1, 0], sizes = [1, 256], strides = [1, 1]} : vector<4x256xf32> to vector<1x256xf32>
    %249 = vector.broadcast %247 : vector<8x1xf32> to vector<8x256xf32>
    %250 = vector.broadcast %248 : vector<1x256xf32> to vector<8x256xf32>
    %251 = arith.mulf %249, %250 : vector<8x256xf32>
    %252 = arith.addf %246, %251 : vector<8x256xf32>
    %253 = vector.extract_strided_slice %240 {offsets = [0, 2], sizes = [8, 1], strides = [1, 1]} : vector<8x4xf32> to vector<8x1xf32>
    %254 = vector.extract_strided_slice %238 {offsets = [2, 0], sizes = [1, 256], strides = [1, 1]} : vector<4x256xf32> to vector<1x256xf32>
    %255 = vector.broadcast %253 : vector<8x1xf32> to vector<8x256xf32>
    %256 = vector.broadcast %254 : vector<1x256xf32> to vector<8x256xf32>
    %257 = arith.mulf %255, %256 : vector<8x256xf32>
    %258 = arith.addf %252, %257 : vector<8x256xf32>
    %259 = vector.extract_strided_slice %240 {offsets = [0, 3], sizes = [8, 1], strides = [1, 1]} : vector<8x4xf32> to vector<8x1xf32>
    %260 = vector.extract_strided_slice %238 {offsets = [3, 0], sizes = [1, 256], strides = [1, 1]} : vector<4x256xf32> to vector<1x256xf32>
    %261 = vector.broadcast %259 : vector<8x1xf32> to vector<8x256xf32>
    %262 = vector.broadcast %260 : vector<1x256xf32> to vector<8x256xf32>
    %263 = arith.mulf %261, %262 : vector<8x256xf32>
    %264 = arith.addf %258, %263 : vector<8x256xf32>
    %265 = vector.extract_strided_slice %1 {offsets = [0, 1], sizes = [4, 255], strides = [1, 1]} : vector<4x256xf32> to vector<4x255xf32>
    %266 = vector.extract_strided_slice %1 {offsets = [0, 0], sizes = [4, 1], strides = [1, 1]} : vector<4x256xf32> to vector<4x1xf32>
    %267 = tpu.concatenate %265, %266 in 1 : vector<4x255xf32>, vector<4x1xf32> -> vector<4x256xf32>
    %c0_i32_54 = arith.constant 0 : i32
    %268 = vector.broadcast %c0_i32_54 : i32 to vector<1x256xi32>
    %269 = arith.addi %4, %268 : vector<1x256xi32>
    %c0_i32_55 = arith.constant 0 : i32
    %270 = vector.broadcast %c0_i32_55 : i32 to vector<1x256xi32>
    %271 = arith.cmpi sge, %269, %270 : vector<1x256xi32>
    %c0_i32_56 = arith.constant 0 : i32
    %272 = vector.broadcast %c0_i32_56 : i32 to vector<1x256xi32>
    %273 = arith.addi %4, %272 : vector<1x256xi32>
    %c16_i32_57 = arith.constant 16 : i32
    %274 = vector.broadcast %c16_i32_57 : i32 to vector<1x256xi32>
    %275 = arith.cmpi slt, %273, %274 : vector<1x256xi32>
    %276 = arith.andi %271, %275 : vector<1x256xi1>
    %c1_i32_58 = arith.constant 1 : i32
    %277 = vector.broadcast %c1_i32_58 : i32 to vector<1x256xi32>
    %278 = arith.addi %6, %277 : vector<1x256xi32>
    %c0_i32_59 = arith.constant 0 : i32
    %279 = vector.broadcast %c0_i32_59 : i32 to vector<1x256xi32>
    %280 = arith.cmpi sge, %278, %279 : vector<1x256xi32>
    %281 = arith.andi %276, %280 : vector<1x256xi1>
    %c1_i32_60 = arith.constant 1 : i32
    %282 = vector.broadcast %c1_i32_60 : i32 to vector<1x256xi32>
    %283 = arith.addi %6, %282 : vector<1x256xi32>
    %c16_i32_61 = arith.constant 16 : i32
    %284 = vector.broadcast %c16_i32_61 : i32 to vector<1x256xi32>
    %285 = arith.cmpi slt, %283, %284 : vector<1x256xi32>
    %286 = arith.andi %281, %285 : vector<1x256xi1>
    %cst_62 = arith.constant 0.000000e+00 : f32
    %287 = vector.shape_cast %286 : vector<1x256xi1> to vector<1x256xi1>
    %288 = vector.broadcast %287 : vector<1x256xi1> to vector<4x256xi1>
    %289 = vector.broadcast %cst_62 : f32 to vector<4x256xf32>
    %290 = arith.select %288, %267, %289 : vector<4x256xi1>, vector<4x256xf32>
    %c5 = arith.constant 5 : index
    %c0_63 = arith.constant 0 : index
    %c0_64 = arith.constant 0 : index
    %291 = vector.load %arg2[%c5, %c0_63, %c0_64] : memref<9x8x4xf32, #tpu.memory_space<vmem>>, vector<1x8x4xf32>
    %292 = vector.shape_cast %291 : vector<1x8x4xf32> to vector<8x4xf32>
    %293 = vector.extract_strided_slice %292 {offsets = [0, 0], sizes = [8, 1], strides = [1, 1]} : vector<8x4xf32> to vector<8x1xf32>
    %294 = vector.extract_strided_slice %290 {offsets = [0, 0], sizes = [1, 256], strides = [1, 1]} : vector<4x256xf32> to vector<1x256xf32>
    %295 = vector.broadcast %293 : vector<8x1xf32> to vector<8x256xf32>
    %296 = vector.broadcast %294 : vector<1x256xf32> to vector<8x256xf32>
    %297 = arith.mulf %295, %296 : vector<8x256xf32>
    %298 = arith.addf %264, %297 : vector<8x256xf32>
    %299 = vector.extract_strided_slice %292 {offsets = [0, 1], sizes = [8, 1], strides = [1, 1]} : vector<8x4xf32> to vector<8x1xf32>
    %300 = vector.extract_strided_slice %290 {offsets = [1, 0], sizes = [1, 256], strides = [1, 1]} : vector<4x256xf32> to vector<1x256xf32>
    %301 = vector.broadcast %299 : vector<8x1xf32> to vector<8x256xf32>
    %302 = vector.broadcast %300 : vector<1x256xf32> to vector<8x256xf32>
    %303 = arith.mulf %301, %302 : vector<8x256xf32>
    %304 = arith.addf %298, %303 : vector<8x256xf32>
    %305 = vector.extract_strided_slice %292 {offsets = [0, 2], sizes = [8, 1], strides = [1, 1]} : vector<8x4xf32> to vector<8x1xf32>
    %306 = vector.extract_strided_slice %290 {offsets = [2, 0], sizes = [1, 256], strides = [1, 1]} : vector<4x256xf32> to vector<1x256xf32>
    %307 = vector.broadcast %305 : vector<8x1xf32> to vector<8x256xf32>
    %308 = vector.broadcast %306 : vector<1x256xf32> to vector<8x256xf32>
    %309 = arith.mulf %307, %308 : vector<8x256xf32>
    %310 = arith.addf %304, %309 : vector<8x256xf32>
    %311 = vector.extract_strided_slice %292 {offsets = [0, 3], sizes = [8, 1], strides = [1, 1]} : vector<8x4xf32> to vector<8x1xf32>
    %312 = vector.extract_strided_slice %290 {offsets = [3, 0], sizes = [1, 256], strides = [1, 1]} : vector<4x256xf32> to vector<1x256xf32>
    %313 = vector.broadcast %311 : vector<8x1xf32> to vector<8x256xf32>
    %314 = vector.broadcast %312 : vector<1x256xf32> to vector<8x256xf32>
    %315 = arith.mulf %313, %314 : vector<8x256xf32>
    %316 = arith.addf %310, %315 : vector<8x256xf32>
    %317 = vector.extract_strided_slice %1 {offsets = [0, 15], sizes = [4, 241], strides = [1, 1]} : vector<4x256xf32> to vector<4x241xf32>
    %318 = vector.extract_strided_slice %1 {offsets = [0, 0], sizes = [4, 15], strides = [1, 1]} : vector<4x256xf32> to vector<4x15xf32>
    %319 = tpu.concatenate %317, %318 in 1 : vector<4x241xf32>, vector<4x15xf32> -> vector<4x256xf32>
    %c1_i32_65 = arith.constant 1 : i32
    %320 = vector.broadcast %c1_i32_65 : i32 to vector<1x256xi32>
    %321 = arith.addi %4, %320 : vector<1x256xi32>
    %c0_i32_66 = arith.constant 0 : i32
    %322 = vector.broadcast %c0_i32_66 : i32 to vector<1x256xi32>
    %323 = arith.cmpi sge, %321, %322 : vector<1x256xi32>
    %c1_i32_67 = arith.constant 1 : i32
    %324 = vector.broadcast %c1_i32_67 : i32 to vector<1x256xi32>
    %325 = arith.addi %4, %324 : vector<1x256xi32>
    %c16_i32_68 = arith.constant 16 : i32
    %326 = vector.broadcast %c16_i32_68 : i32 to vector<1x256xi32>
    %327 = arith.cmpi slt, %325, %326 : vector<1x256xi32>
    %328 = arith.andi %323, %327 : vector<1x256xi1>
    %c-1_i32_69 = arith.constant -1 : i32
    %329 = vector.broadcast %c-1_i32_69 : i32 to vector<1x256xi32>
    %330 = arith.addi %6, %329 : vector<1x256xi32>
    %c0_i32_70 = arith.constant 0 : i32
    %331 = vector.broadcast %c0_i32_70 : i32 to vector<1x256xi32>
    %332 = arith.cmpi sge, %330, %331 : vector<1x256xi32>
    %333 = arith.andi %328, %332 : vector<1x256xi1>
    %c-1_i32_71 = arith.constant -1 : i32
    %334 = vector.broadcast %c-1_i32_71 : i32 to vector<1x256xi32>
    %335 = arith.addi %6, %334 : vector<1x256xi32>
    %c16_i32_72 = arith.constant 16 : i32
    %336 = vector.broadcast %c16_i32_72 : i32 to vector<1x256xi32>
    %337 = arith.cmpi slt, %335, %336 : vector<1x256xi32>
    %338 = arith.andi %333, %337 : vector<1x256xi1>
    %cst_73 = arith.constant 0.000000e+00 : f32
    %339 = vector.shape_cast %338 : vector<1x256xi1> to vector<1x256xi1>
    %340 = vector.broadcast %339 : vector<1x256xi1> to vector<4x256xi1>
    %341 = vector.broadcast %cst_73 : f32 to vector<4x256xf32>
    %342 = arith.select %340, %319, %341 : vector<4x256xi1>, vector<4x256xf32>
    %c6 = arith.constant 6 : index
    %c0_74 = arith.constant 0 : index
    %c0_75 = arith.constant 0 : index
    %343 = vector.load %arg2[%c6, %c0_74, %c0_75] : memref<9x8x4xf32, #tpu.memory_space<vmem>>, vector<1x8x4xf32>
    %344 = vector.shape_cast %343 : vector<1x8x4xf32> to vector<8x4xf32>
    %345 = vector.extract_strided_slice %344 {offsets = [0, 0], sizes = [8, 1], strides = [1, 1]} : vector<8x4xf32> to vector<8x1xf32>
    %346 = vector.extract_strided_slice %342 {offsets = [0, 0], sizes = [1, 256], strides = [1, 1]} : vector<4x256xf32> to vector<1x256xf32>
    %347 = vector.broadcast %345 : vector<8x1xf32> to vector<8x256xf32>
    %348 = vector.broadcast %346 : vector<1x256xf32> to vector<8x256xf32>
    %349 = arith.mulf %347, %348 : vector<8x256xf32>
    %350 = arith.addf %316, %349 : vector<8x256xf32>
    %351 = vector.extract_strided_slice %344 {offsets = [0, 1], sizes = [8, 1], strides = [1, 1]} : vector<8x4xf32> to vector<8x1xf32>
    %352 = vector.extract_strided_slice %342 {offsets = [1, 0], sizes = [1, 256], strides = [1, 1]} : vector<4x256xf32> to vector<1x256xf32>
    %353 = vector.broadcast %351 : vector<8x1xf32> to vector<8x256xf32>
    %354 = vector.broadcast %352 : vector<1x256xf32> to vector<8x256xf32>
    %355 = arith.mulf %353, %354 : vector<8x256xf32>
    %356 = arith.addf %350, %355 : vector<8x256xf32>
    %357 = vector.extract_strided_slice %344 {offsets = [0, 2], sizes = [8, 1], strides = [1, 1]} : vector<8x4xf32> to vector<8x1xf32>
    %358 = vector.extract_strided_slice %342 {offsets = [2, 0], sizes = [1, 256], strides = [1, 1]} : vector<4x256xf32> to vector<1x256xf32>
    %359 = vector.broadcast %357 : vector<8x1xf32> to vector<8x256xf32>
    %360 = vector.broadcast %358 : vector<1x256xf32> to vector<8x256xf32>
    %361 = arith.mulf %359, %360 : vector<8x256xf32>
    %362 = arith.addf %356, %361 : vector<8x256xf32>
    %363 = vector.extract_strided_slice %344 {offsets = [0, 3], sizes = [8, 1], strides = [1, 1]} : vector<8x4xf32> to vector<8x1xf32>
    %364 = vector.extract_strided_slice %342 {offsets = [3, 0], sizes = [1, 256], strides = [1, 1]} : vector<4x256xf32> to vector<1x256xf32>
    %365 = vector.broadcast %363 : vector<8x1xf32> to vector<8x256xf32>
    %366 = vector.broadcast %364 : vector<1x256xf32> to vector<8x256xf32>
    %367 = arith.mulf %365, %366 : vector<8x256xf32>
    %368 = arith.addf %362, %367 : vector<8x256xf32>
    %369 = vector.extract_strided_slice %1 {offsets = [0, 16], sizes = [4, 240], strides = [1, 1]} : vector<4x256xf32> to vector<4x240xf32>
    %370 = vector.extract_strided_slice %1 {offsets = [0, 0], sizes = [4, 16], strides = [1, 1]} : vector<4x256xf32> to vector<4x16xf32>
    %371 = tpu.concatenate %369, %370 in 1 : vector<4x240xf32>, vector<4x16xf32> -> vector<4x256xf32>
    %c1_i32_76 = arith.constant 1 : i32
    %372 = vector.broadcast %c1_i32_76 : i32 to vector<1x256xi32>
    %373 = arith.addi %4, %372 : vector<1x256xi32>
    %c0_i32_77 = arith.constant 0 : i32
    %374 = vector.broadcast %c0_i32_77 : i32 to vector<1x256xi32>
    %375 = arith.cmpi sge, %373, %374 : vector<1x256xi32>
    %c1_i32_78 = arith.constant 1 : i32
    %376 = vector.broadcast %c1_i32_78 : i32 to vector<1x256xi32>
    %377 = arith.addi %4, %376 : vector<1x256xi32>
    %c16_i32_79 = arith.constant 16 : i32
    %378 = vector.broadcast %c16_i32_79 : i32 to vector<1x256xi32>
    %379 = arith.cmpi slt, %377, %378 : vector<1x256xi32>
    %380 = arith.andi %375, %379 : vector<1x256xi1>
    %c0_i32_80 = arith.constant 0 : i32
    %381 = vector.broadcast %c0_i32_80 : i32 to vector<1x256xi32>
    %382 = arith.addi %6, %381 : vector<1x256xi32>
    %c0_i32_81 = arith.constant 0 : i32
    %383 = vector.broadcast %c0_i32_81 : i32 to vector<1x256xi32>
    %384 = arith.cmpi sge, %382, %383 : vector<1x256xi32>
    %385 = arith.andi %380, %384 : vector<1x256xi1>
    %c0_i32_82 = arith.constant 0 : i32
    %386 = vector.broadcast %c0_i32_82 : i32 to vector<1x256xi32>
    %387 = arith.addi %6, %386 : vector<1x256xi32>
    %c16_i32_83 = arith.constant 16 : i32
    %388 = vector.broadcast %c16_i32_83 : i32 to vector<1x256xi32>
    %389 = arith.cmpi slt, %387, %388 : vector<1x256xi32>
    %390 = arith.andi %385, %389 : vector<1x256xi1>
    %cst_84 = arith.constant 0.000000e+00 : f32
    %391 = vector.shape_cast %390 : vector<1x256xi1> to vector<1x256xi1>
    %392 = vector.broadcast %391 : vector<1x256xi1> to vector<4x256xi1>
    %393 = vector.broadcast %cst_84 : f32 to vector<4x256xf32>
    %394 = arith.select %392, %371, %393 : vector<4x256xi1>, vector<4x256xf32>
    %c7 = arith.constant 7 : index
    %c0_85 = arith.constant 0 : index
    %c0_86 = arith.constant 0 : index
    %395 = vector.load %arg2[%c7, %c0_85, %c0_86] : memref<9x8x4xf32, #tpu.memory_space<vmem>>, vector<1x8x4xf32>
    %396 = vector.shape_cast %395 : vector<1x8x4xf32> to vector<8x4xf32>
    %397 = vector.extract_strided_slice %396 {offsets = [0, 0], sizes = [8, 1], strides = [1, 1]} : vector<8x4xf32> to vector<8x1xf32>
    %398 = vector.extract_strided_slice %394 {offsets = [0, 0], sizes = [1, 256], strides = [1, 1]} : vector<4x256xf32> to vector<1x256xf32>
    %399 = vector.broadcast %397 : vector<8x1xf32> to vector<8x256xf32>
    %400 = vector.broadcast %398 : vector<1x256xf32> to vector<8x256xf32>
    %401 = arith.mulf %399, %400 : vector<8x256xf32>
    %402 = arith.addf %368, %401 : vector<8x256xf32>
    %403 = vector.extract_strided_slice %396 {offsets = [0, 1], sizes = [8, 1], strides = [1, 1]} : vector<8x4xf32> to vector<8x1xf32>
    %404 = vector.extract_strided_slice %394 {offsets = [1, 0], sizes = [1, 256], strides = [1, 1]} : vector<4x256xf32> to vector<1x256xf32>
    %405 = vector.broadcast %403 : vector<8x1xf32> to vector<8x256xf32>
    %406 = vector.broadcast %404 : vector<1x256xf32> to vector<8x256xf32>
    %407 = arith.mulf %405, %406 : vector<8x256xf32>
    %408 = arith.addf %402, %407 : vector<8x256xf32>
    %409 = vector.extract_strided_slice %396 {offsets = [0, 2], sizes = [8, 1], strides = [1, 1]} : vector<8x4xf32> to vector<8x1xf32>
    %410 = vector.extract_strided_slice %394 {offsets = [2, 0], sizes = [1, 256], strides = [1, 1]} : vector<4x256xf32> to vector<1x256xf32>
    %411 = vector.broadcast %409 : vector<8x1xf32> to vector<8x256xf32>
    %412 = vector.broadcast %410 : vector<1x256xf32> to vector<8x256xf32>
    %413 = arith.mulf %411, %412 : vector<8x256xf32>
    %414 = arith.addf %408, %413 : vector<8x256xf32>
    %415 = vector.extract_strided_slice %396 {offsets = [0, 3], sizes = [8, 1], strides = [1, 1]} : vector<8x4xf32> to vector<8x1xf32>
    %416 = vector.extract_strided_slice %394 {offsets = [3, 0], sizes = [1, 256], strides = [1, 1]} : vector<4x256xf32> to vector<1x256xf32>
    %417 = vector.broadcast %415 : vector<8x1xf32> to vector<8x256xf32>
    %418 = vector.broadcast %416 : vector<1x256xf32> to vector<8x256xf32>
    %419 = arith.mulf %417, %418 : vector<8x256xf32>
    %420 = arith.addf %414, %419 : vector<8x256xf32>
    %421 = vector.extract_strided_slice %1 {offsets = [0, 17], sizes = [4, 239], strides = [1, 1]} : vector<4x256xf32> to vector<4x239xf32>
    %422 = vector.extract_strided_slice %1 {offsets = [0, 0], sizes = [4, 17], strides = [1, 1]} : vector<4x256xf32> to vector<4x17xf32>
    %423 = tpu.concatenate %421, %422 in 1 : vector<4x239xf32>, vector<4x17xf32> -> vector<4x256xf32>
    %c1_i32_87 = arith.constant 1 : i32
    %424 = vector.broadcast %c1_i32_87 : i32 to vector<1x256xi32>
    %425 = arith.addi %4, %424 : vector<1x256xi32>
    %c0_i32_88 = arith.constant 0 : i32
    %426 = vector.broadcast %c0_i32_88 : i32 to vector<1x256xi32>
    %427 = arith.cmpi sge, %425, %426 : vector<1x256xi32>
    %c1_i32_89 = arith.constant 1 : i32
    %428 = vector.broadcast %c1_i32_89 : i32 to vector<1x256xi32>
    %429 = arith.addi %4, %428 : vector<1x256xi32>
    %c16_i32_90 = arith.constant 16 : i32
    %430 = vector.broadcast %c16_i32_90 : i32 to vector<1x256xi32>
    %431 = arith.cmpi slt, %429, %430 : vector<1x256xi32>
    %432 = arith.andi %427, %431 : vector<1x256xi1>
    %c1_i32_91 = arith.constant 1 : i32
    %433 = vector.broadcast %c1_i32_91 : i32 to vector<1x256xi32>
    %434 = arith.addi %6, %433 : vector<1x256xi32>
    %c0_i32_92 = arith.constant 0 : i32
    %435 = vector.broadcast %c0_i32_92 : i32 to vector<1x256xi32>
    %436 = arith.cmpi sge, %434, %435 : vector<1x256xi32>
    %437 = arith.andi %432, %436 : vector<1x256xi1>
    %c1_i32_93 = arith.constant 1 : i32
    %438 = vector.broadcast %c1_i32_93 : i32 to vector<1x256xi32>
    %439 = arith.addi %6, %438 : vector<1x256xi32>
    %c16_i32_94 = arith.constant 16 : i32
    %440 = vector.broadcast %c16_i32_94 : i32 to vector<1x256xi32>
    %441 = arith.cmpi slt, %439, %440 : vector<1x256xi32>
    %442 = arith.andi %437, %441 : vector<1x256xi1>
    %cst_95 = arith.constant 0.000000e+00 : f32
    %443 = vector.shape_cast %442 : vector<1x256xi1> to vector<1x256xi1>
    %444 = vector.broadcast %443 : vector<1x256xi1> to vector<4x256xi1>
    %445 = vector.broadcast %cst_95 : f32 to vector<4x256xf32>
    %446 = arith.select %444, %423, %445 : vector<4x256xi1>, vector<4x256xf32>
    %c8 = arith.constant 8 : index
    %c0_96 = arith.constant 0 : index
    %c0_97 = arith.constant 0 : index
    %447 = vector.load %arg2[%c8, %c0_96, %c0_97] : memref<9x8x4xf32, #tpu.memory_space<vmem>>, vector<1x8x4xf32>
    %448 = vector.shape_cast %447 : vector<1x8x4xf32> to vector<8x4xf32>
    %449 = vector.extract_strided_slice %448 {offsets = [0, 0], sizes = [8, 1], strides = [1, 1]} : vector<8x4xf32> to vector<8x1xf32>
    %450 = vector.extract_strided_slice %446 {offsets = [0, 0], sizes = [1, 256], strides = [1, 1]} : vector<4x256xf32> to vector<1x256xf32>
    %451 = vector.broadcast %449 : vector<8x1xf32> to vector<8x256xf32>
    %452 = vector.broadcast %450 : vector<1x256xf32> to vector<8x256xf32>
    %453 = arith.mulf %451, %452 : vector<8x256xf32>
    %454 = arith.addf %420, %453 : vector<8x256xf32>
    %455 = vector.extract_strided_slice %448 {offsets = [0, 1], sizes = [8, 1], strides = [1, 1]} : vector<8x4xf32> to vector<8x1xf32>
    %456 = vector.extract_strided_slice %446 {offsets = [1, 0], sizes = [1, 256], strides = [1, 1]} : vector<4x256xf32> to vector<1x256xf32>
    %457 = vector.broadcast %455 : vector<8x1xf32> to vector<8x256xf32>
    %458 = vector.broadcast %456 : vector<1x256xf32> to vector<8x256xf32>
    %459 = arith.mulf %457, %458 : vector<8x256xf32>
    %460 = arith.addf %454, %459 : vector<8x256xf32>
    %461 = vector.extract_strided_slice %448 {offsets = [0, 2], sizes = [8, 1], strides = [1, 1]} : vector<8x4xf32> to vector<8x1xf32>
    %462 = vector.extract_strided_slice %446 {offsets = [2, 0], sizes = [1, 256], strides = [1, 1]} : vector<4x256xf32> to vector<1x256xf32>
    %463 = vector.broadcast %461 : vector<8x1xf32> to vector<8x256xf32>
    %464 = vector.broadcast %462 : vector<1x256xf32> to vector<8x256xf32>
    %465 = arith.mulf %463, %464 : vector<8x256xf32>
    %466 = arith.addf %460, %465 : vector<8x256xf32>
    %467 = vector.extract_strided_slice %448 {offsets = [0, 3], sizes = [8, 1], strides = [1, 1]} : vector<8x4xf32> to vector<8x1xf32>
    %468 = vector.extract_strided_slice %446 {offsets = [3, 0], sizes = [1, 256], strides = [1, 1]} : vector<4x256xf32> to vector<1x256xf32>
    %469 = vector.broadcast %467 : vector<8x1xf32> to vector<8x256xf32>
    %470 = vector.broadcast %468 : vector<1x256xf32> to vector<8x256xf32>
    %471 = arith.mulf %469, %470 : vector<8x256xf32>
    %472 = arith.addf %466, %471 : vector<8x256xf32>
    %c0_98 = arith.constant 0 : index
    %c0_99 = arith.constant 0 : index
    %c0_100 = arith.constant 0 : index
    %473 = vector.load %arg3[%c0_98, %c0_99, %c0_100] : memref<1x8x256xf32, #tpu.memory_space<vmem>>, vector<1x8x256xf32>
    %474 = vector.shape_cast %473 : vector<1x8x256xf32> to vector<8x256xf32>
    %475 = vector.shape_cast %472 : vector<8x256xf32> to vector<1x8x256xf32>
    tpu.vector_store %arg3[%c0_98, %c0_99, %c0_100], %475 {strides = array<i32>} : memref<1x8x256xf32, #tpu.memory_space<vmem>>, vector<1x8x256xf32>,
    return
  }
  func.func @transform_0(%arg0: i32) -> (i32, i32, i32) {
    %c0_i32 = arith.constant 0 : i32
    %c0_i32_0 = arith.constant 0 : i32
    %c0_i32_1 = arith.constant 0 : i32
    return %arg0, %c0_i32, %c0_i32_0 : i32, i32, i32
  }
  func.func @transform_1(%arg0: i32) -> (i32, i32, i32) {
    %c0_i32 = arith.constant 0 : i32
    %c0_i32_0 = arith.constant 0 : i32
    %c0_i32_1 = arith.constant 0 : i32
    %c0_i32_2 = arith.constant 0 : i32
    return %c0_i32, %c0_i32_0, %c0_i32_1 : i32, i32, i32
  }
  func.func @transform_2(%arg0: i32) -> (i32, i32, i32) {
    %c0_i32 = arith.constant 0 : i32
    %c0_i32_0 = arith.constant 0 : i32
    %c0_i32_1 = arith.constant 0 : i32
    return %arg0, %c0_i32, %c0_i32_0 : i32, i32, i32
  }
}

</mosaic_0001>

<llo_original>
// kernel: tpu_custom_call.1
$region0: #{tpu_custom_call.1}
  #allocation0 [shape = 'u32[]', space=smem, size = 0x4, offset = 0x4, fixed_abs, tag = 'smem constant byte address 0x4 - core index']
  #allocation1 [shape = 'u32[144,128]{1,0:T(1,128)}', space=vmem, size = 0x12000, scoped, tag = 'internal scratch']
  %s0 = inlined_call_operand.vmem [shape: f32[2,4,256], index: 0, kind: input, shape index: {}]
  %s1 = inlined_call_operand.vmem [shape: f32[9,8,4], index: 1, kind: input, shape index: {}]
  %s2 = inlined_call_operand.hbm [shape: f32[2,8,256], index: 2, kind: output, shape index: {}]
  %s3 = sld [smem:[#allocation0]]
  $region41: #{tpu_custom_call.1} parent=0
    _
  %s5 = ssub.s32 1, %s3
  %s6 = scalar_select 0, %s5, %s3
  $region1: #{tpu_custom_call.1} parent=0
    #allocation2 [shape = 'u8[16384]{0}', space=vmem, size = 0x4000, scoped, tag = 'output window, operand 0']
    #allocation3 [shape = 's32[2]{0}', space=sflag, size = 0x8, scoped, tag = 'scoped memory for tpu_custom_call.1']
    %7 = vsyncpa [#allocation3], 0
    %s8 = scalar_lea.sflag [#allocation3], 1
    %9 = vsyncpa %s8, 0
    loop: start=0, step=1, limit=4
    $region2: #{tpu_custom_call.1} parent=1 // loop_pre_header
      _
    $region3: #{tpu_custom_call.1} parent=1 // loop_header
      %s11 = sphi 0, %s15
      %p12 = scmp.ge.s32.totalorder %s11, 4
      %s21 = sphi 0, %s23
      %s24 = sphi 0, %s21
      %s25 = sphi 0, %s24
      %s41 = sphi 0, %s25
      %s45 = sphi 0, %s45
      %s47 = sphi 0, %s45
      %s48 = sphi 0, %s47
      %s62 = sphi 0, %s48
      %s68 = sphi 0, %s70
      %s71 = sphi 0, %s68
      %s72 = sphi 0, %s71
      %s88 = sphi 0, %s72
    $region4: #{tpu_custom_call.1} parent=1 // loop_header_branch
      %14 = sbr.rel (%p12) target = $region8
    $region5: #{tpu_custom_call.1} parent=1 // loop_body
      %s16 = ssub.s32 %s11, 1
      %s17 = ssub.s32 %s11, 2
      %s18 = sadd.s32 %s11, 1
      %s19 = ssub.s32 %s11, %s18
      %p20 = scmp.eq.s32.totalorder %s19, 0
      %s22 = sadd.s32 %s21, 1
      %s23 = scalar_select %p20, %s21, %s22
      %p26 = pneg %p20
      %p27 = scmp.eq.s32.totalorder %s11, 1
      %p28 = por %p26, %p27
      %p29 = scmp.ne.s32.totalorder %s21, %s24
      %p30 = scmp.eq.s32.totalorder %s11, 0
      %p31 = por %p29, %p30
      %p32 = scmp.ne.s32.totalorder %s21, %s24
      %p33 = scmp.eq.s32.totalorder %s16, 1
      %p34 = por %p32, %p33
      %p35 = scmp.ne.s32.totalorder %s24, %s25
      %p36 = scmp.eq.s32.totalorder %s16, 0
      %p37 = por %p35, %p36
      %p38 = scmp.ne.s32.totalorder %s24, %s25
      %p39 = scmp.eq.s32.totalorder %s17, 1
      %p40 = por %p38, %p39
      %p42 = scmp.ne.s32.totalorder %s25, %s41
      %p43 = scmp.eq.s32.totalorder %s17, 0
      %p44 = por %p42, %p43
      %s46 = sadd.s32 %s45, 1
      %p49 = scmp.eq.s32.totalorder %s11, 1
      %p50 = scmp.ne.s32.totalorder %s45, %s47
      %p51 = scmp.eq.s32.totalorder %s11, 0
      %p52 = por %p50, %p51
      %p53 = scmp.ne.s32.totalorder %s45, %s47
      %p54 = scmp.eq.s32.totalorder %s16, 1
      %p55 = por %p53, %p54
      %p56 = scmp.ne.s32.totalorder %s47, %s48
      %p57 = scmp.eq.s32.totalorder %s16, 0
      %p58 = por %p56, %p57
      %p59 = scmp.ne.s32.totalorder %s47, %s48
      %p60 = scmp.eq.s32.totalorder %s17, 1
      %p61 = por %p59, %p60
      %p63 = scmp.ne.s32.totalorder %s48, %s62
      %p64 = scmp.eq.s32.totalorder %s17, 0
      %p65 = por %p63, %p64
      %s66 = ssub.s32 %s11, %s18
      %p67 = scmp.eq.s32.totalorder %s66, 0
      %s69 = sadd.s32 %s68, 1
      %s70 = scalar_select %p67, %s68, %s69
      %p73 = pneg %p67
      %p74 = scmp.eq.s32.totalorder %s11, 1
      %p75 = por %p73, %p74
      %p76 = scmp.ne.s32.totalorder %s68, %s71
      %p77 = scmp.eq.s32.totalorder %s11, 0
      %p78 = por %p76, %p77
      %p79 = scmp.ne.s32.totalorder %s68, %s71
      %p80 = scmp.eq.s32.totalorder %s16, 1
      %p81 = por %p79, %p80
      %p82 = scmp.ne.s32.totalorder %s71, %s72
      %p83 = scmp.eq.s32.totalorder %s16, 0
      %p84 = por %p82, %p83
      %p85 = scmp.ne.s32.totalorder %s71, %s72
      %p86 = scmp.eq.s32.totalorder %s17, 1
      %p87 = por %p85, %p86
      %p89 = scmp.ne.s32.totalorder %s72, %s88
      %p90 = scmp.eq.s32.totalorder %s17, 0
      %p91 = por %p89, %p90
      %p92 = scmp.le.s32.totalorder 1, %s11
      %p93 = scmp.lt.s32.totalorder %s11, 3
      %p94 = pnand %p92, %p93
      %p95 = pneg %p94
      // Predicated region
      $region9: #{tpu_custom_call.1} parent=5 // pred_check
        _
      $region10: #{tpu_custom_call.1} parent=5 // pred_check_branch
        %97 = sbr.rel (%p94) target = $region12
      $region11: #{tpu_custom_call.1} parent=5 // pred_region
        %s98 = ssub.s32 %s11, 1
        // Predicated region
        $region13: #{tpu_custom_call.1} parent=11 // pred_check
          %p99 = pneg %p58
        $region14: #{tpu_custom_call.1} parent=11 // pred_check_branch
          %101 = sbr.rel (%p99) target = $region16
        $region15: #{tpu_custom_call.1} parent=11 // pred_region
          _
        $region16: #{tpu_custom_call.1} parent=11 // pred_fallthru
          _
      $region12: #{tpu_custom_call.1} parent=5 // pred_fallthru
        _
      %p102 = scmp.lt.s32.totalorder %s11, 2
      // Predicated region
      $region17: #{tpu_custom_call.1} parent=5 // pred_check
        %p103 = pneg %p102
      $region18: #{tpu_custom_call.1} parent=5 // pred_check_branch
        %105 = sbr.rel (%p103) target = $region20
      $region19: #{tpu_custom_call.1} parent=5 // pred_region
        // Predicated region
        $region21: #{tpu_custom_call.1} parent=19 // pred_check
          %p106 = pneg %p31
        $region22: #{tpu_custom_call.1} parent=19 // pred_check_branch
          %108 = sbr.rel (%p106) target = $region24
        $region23: #{tpu_custom_call.1} parent=19 // pred_region
          %p109 = scmp.lt.s32.totalorder %s11, 1
          %s110 = scalar_select %p109, %s11, 1
          %s111 = smul.addr %s110, 2
          %s112 = smul.addr %s111, 4
          %s113 = scalar_lea.vmem %s0, %s112
        $region24: #{tpu_custom_call.1} parent=19 // pred_fallthru
          _
      $region20: #{tpu_custom_call.1} parent=5 // pred_fallthru
        _
      %p114 = scmp.le.s32.totalorder 1, %s11
      %p115 = scmp.lt.s32.totalorder %s11, 3
      %p116 = pnand %p114, %p115
      %p117 = pneg %p116
      // Predicated region
      $region25: #{tpu_custom_call.1} parent=5 // pred_check
        _
      $region26: #{tpu_custom_call.1} parent=5 // pred_check_branch
        %119 = sbr.rel (%p116) target = $region28
      $region27: #{tpu_custom_call.1} parent=5 // pred_region
        %s120 = ssub.s32 %s11, 1
        %p121 = scmp.lt.s32.totalorder %s16, 1
        %s122 = scalar_select %p121, %s16, 1
        %s123 = smul.addr %s122, 2
        %s124 = smul.addr %s123, 4
        %s125 = scalar_lea.vmem %s0, %s124
        %p126 = pneg %p37
        %p127 = pneg %p34
        %p128 = pneg %p58
        %p129 = pneg %p55
        %p130 = pneg %p84
        %p131 = pneg %p81
        %s132 = sand.u32 %s71, 1
        %s133 = scalar_lea.sflag [#allocation3], %s132
        %s134 = sand.u32 %s71, 1
        %s135 = smul.addr %s134, 16
        %s136 = scalar_lea.vmem [#allocation2], %s135
        %p137 = scmp.lt.s32.totalorder %s16, 1
        %s138 = scalar_select %p137, %s16, 1
        %s139 = smul.addr %s138, 2
        %s140 = smul.addr %s139, 4
        %s141 = scalar_lea.vmem %s0, %s140
        %v142 = vld [vmem:[%s141] sm:$0xff]
        %v143 = vlaneseq
        %v144 = vand.u32 %v143, 127
        %v145 = vadd.s32 %v144, 128
        %v146 = vshra.s32 %v144, 4
        %v147 = vshra.s32 %v145, 4
        %v148 = vand.u32 %v144, 15
        %v149 = vand.u32 %v145, 15
        %v151 = vcombine.high %v142, %v142
        %152 = vrot.lane.b32.xlu0 %v151, 17
        %v153 = vpop.permute.xlu0 %152
        %155 = vrot.lane.b32.xlu0 %v142, 17
        %v156 = vpop.permute.xlu0 %155
        %vm157 = vcmask 138240
        %v158 = vsel %vm157, %v156, %v153
        %v161 = vsel %vm157, %v153, %v156
        %v162 = vadd.s32 %v146, 4294967295
        %v163 = vadd.s32 %v147, 4294967295
        %vm164 = vcmp.ge.s32.totalorder %v162, 0
        %vm165 = vcmp.ge.s32.totalorder %v163, 0
        %vm166 = vcmp.lt.s32.totalorder %v162, 16
        %vm167 = vcmp.lt.s32.totalorder %v163, 16
        %vm168 = vmand %vm164, %vm166
        %vm169 = vmand %vm165, %vm167
        %v170 = vadd.s32 %v148, 4294967295
        %v171 = vadd.s32 %v149, 4294967295
        %vm172 = vcmp.ge.s32.totalorder %v170, 0
        %vm173 = vcmp.ge.s32.totalorder %v171, 0
        %vm174 = vmand %vm168, %vm172
        %vm175 = vmand %vm169, %vm173
        %vm176 = vcmp.lt.s32.totalorder %v170, 16
        %vm177 = vcmp.lt.s32.totalorder %v171, 16
        %vm178 = vmand %vm174, %vm176
        %vm179 = vmand %vm175, %vm177
        %v180 = vsel %vm178, 1, 0
        %v181 = vsel %vm179, 1, 0
        %vm182 = vcmp.eq.s32.totalorder %v180, 1
        %vm183 = vcmp.eq.s32.totalorder %v181, 1
        %v184 = vsel %vm182, %v161, 0.0
        %v185 = vsel %vm183, %v158, 0.0
        %v186 = vld [vmem:[%s1] sm:$0xff]
        %188 = vset.pattern.permute.xlu0 0
        %189 = vperm.xlu0 %188, %v186
        %v190 = vpop.permute.xlu0 %189
        %v192 = vlaneseq
        %v193 = vshrl.u32 %v192, 7
        %v194 = vsub.s32 0, %v193
        %v195 = vrot.slane %v184, %v194
        %v196 = vlaneseq
        %v197 = vshrl.u32 %v196, 7
        %v198 = vsub.s32 0, %v197
        %v199 = vrot.slane %v185, %v198
        %v200 = vmul.f32 %v190, %v195
        %v201 = vmul.f32 %v190, %v199
        %v202 = vadd.f32 %v200, 0.0
        %v203 = vadd.f32 %v201, 0.0
        %204 = vset.pattern.permute.xlu0 1
        %205 = vperm.xlu0 %204, %v186
        %v206 = vpop.permute.xlu0 %205
        %v208 = vlaneseq
        %v209 = vshrl.u32 %v208, 7
        %v210 = vsub.s32 1, %v209
        %v211 = vrot.slane %v184, %v210
        %v212 = vlaneseq
        %v213 = vshrl.u32 %v212, 7
        %v214 = vsub.s32 1, %v213
        %v215 = vrot.slane %v185, %v214
        %v216 = vmul.f32 %v206, %v211
        %v217 = vmul.f32 %v206, %v215
        %v218 = vadd.f32 %v202, %v216
        %v219 = vadd.f32 %v203, %v217
        %220 = vset.pattern.permute.xlu0 2
        %221 = vperm.xlu0 %220, %v186
        %v222 = vpop.permute.xlu0 %221
        %v224 = vlaneseq
        %v225 = vshrl.u32 %v224, 7
        %v226 = vsub.s32 2, %v225
        %v227 = vrot.slane %v184, %v226
        %v228 = vlaneseq
        %v229 = vshrl.u32 %v228, 7
        %v230 = vsub.s32 2, %v229
        %v231 = vrot.slane %v185, %v230
        %v232 = vmul.f32 %v222, %v227
        %v233 = vmul.f32 %v222, %v231
        %v234 = vadd.f32 %v218, %v232
        %v235 = vadd.f32 %v219, %v233
        %236 = vset.pattern.permute.xlu0 3
        %237 = vperm.xlu0 %236, %v186
        %v238 = vpop.permute.xlu0 %237
        %v240 = vlaneseq
        %v241 = vshrl.u32 %v240, 7
        %v242 = vsub.s32 3, %v241
        %v243 = vrot.slane %v184, %v242
        %v244 = vlaneseq
        %v245 = vshrl.u32 %v244, 7
        %v246 = vsub.s32 3, %v245
        %v247 = vrot.slane %v185, %v246
        %v248 = vmul.f32 %v238, %v243
        %v249 = vmul.f32 %v238, %v247
        %v250 = vadd.f32 %v234, %v248
        %v251 = vadd.f32 %v235, %v249
        %252 = vrot.lane.b32.xlu0 %v151, 16
        %v253 = vpop.permute.xlu0 %252
        %255 = vrot.lane.b32.xlu0 %v142, 16
        %v256 = vpop.permute.xlu0 %255
        %vm257 = vcmask 130048
        %v258 = vsel %vm257, %v256, %v253
        %v261 = vsel %vm257, %v253, %v256
        %vm262 = vcmp.ge.s32.totalorder %v148, 0
        %vm263 = vcmp.ge.s32.totalorder %v149, 0
        %vm264 = vmand %vm168, %vm262
        %vm265 = vmand %vm169, %vm263
        %vm266 = vcmp.lt.s32.totalorder %v148, 16
        %vm267 = vcmp.lt.s32.totalorder %v149, 16
        %vm268 = vmand %vm264, %vm266
        %vm269 = vmand %vm265, %vm267
        %v270 = vsel %vm268, 1, 0
        %v271 = vsel %vm269, 1, 0
        %vm272 = vcmp.eq.s32.totalorder %v270, 1
        %vm273 = vcmp.eq.s32.totalorder %v271, 1
        %v274 = vsel %vm272, %v261, 0.0
        %v275 = vsel %vm273, %v258, 0.0
        %s276 = scalar_lea.vmem %s1, 8
        %v277 = vld [vmem:[%s276] sm:$0xff]
        %279 = vset.pattern.permute.xlu0 0
        %280 = vperm.xlu0 %279, %v277
        %v281 = vpop.permute.xlu0 %280
        %v283 = vlaneseq
        %v284 = vshrl.u32 %v283, 7
        %v285 = vsub.s32 0, %v284
        %v286 = vrot.slane %v274, %v285
        %v287 = vlaneseq
        %v288 = vshrl.u32 %v287, 7
        %v289 = vsub.s32 0, %v288
        %v290 = vrot.slane %v275, %v289
        %v291 = vmul.f32 %v281, %v286
        %v292 = vmul.f32 %v281, %v290
        %v293 = vadd.f32 %v250, %v291
        %v294 = vadd.f32 %v251, %v292
        %295 = vset.pattern.permute.xlu0 1
        %296 = vperm.xlu0 %295, %v277
        %v297 = vpop.permute.xlu0 %296
        %v299 = vlaneseq
        %v300 = vshrl.u32 %v299, 7
        %v301 = vsub.s32 1, %v300
        %v302 = vrot.slane %v274, %v301
        %v303 = vlaneseq
        %v304 = vshrl.u32 %v303, 7
        %v305 = vsub.s32 1, %v304
        %v306 = vrot.slane %v275, %v305
        %v307 = vmul.f32 %v297, %v302
        %v308 = vmul.f32 %v297, %v306
        %v309 = vadd.f32 %v293, %v307
        %v310 = vadd.f32 %v294, %v308
        %311 = vset.pattern.permute.xlu0 2
        %312 = vperm.xlu0 %311, %v277
        %v313 = vpop.permute.xlu0 %312
        %v315 = vlaneseq
        %v316 = vshrl.u32 %v315, 7
        %v317 = vsub.s32 2, %v316
        %v318 = vrot.slane %v274, %v317
        %v319 = vlaneseq
        %v320 = vshrl.u32 %v319, 7
        %v321 = vsub.s32 2, %v320
        %v322 = vrot.slane %v275, %v321
        %v323 = vmul.f32 %v313, %v318
        %v324 = vmul.f32 %v313, %v322
        %v325 = vadd.f32 %v309, %v323
        %v326 = vadd.f32 %v310, %v324
        %327 = vset.pattern.permute.xlu0 3
        %328 = vperm.xlu0 %327, %v277
        %v329 = vpop.permute.xlu0 %328
        %v331 = vlaneseq
        %v332 = vshrl.u32 %v331, 7
        %v333 = vsub.s32 3, %v332
        %v334 = vrot.slane %v274, %v333
        %v335 = vlaneseq
        %v336 = vshrl.u32 %v335, 7
        %v337 = vsub.s32 3, %v336
        %v338 = vrot.slane %v275, %v337
        %v339 = vmul.f32 %v329, %v334
        %v340 = vmul.f32 %v329, %v338
        %v341 = vadd.f32 %v325, %v339
        %v342 = vadd.f32 %v326, %v340
        %343 = vrot.lane.b32.xlu0 %v151, 15
        %v344 = vpop.permute.xlu0 %343
        %346 = vrot.lane.b32.xlu0 %v142, 15
        %v347 = vpop.permute.xlu0 %346
        %vm348 = vcmask 121856
        %v349 = vsel %vm348, %v347, %v344
        %v352 = vsel %vm348, %v344, %v347
        %v353 = vadd.s32 %v148, 1
        %v354 = vadd.s32 %v149, 1
        %vm355 = vcmp.ge.s32.totalorder %v353, 0
        %vm356 = vcmp.ge.s32.totalorder %v354, 0
        %vm357 = vmand %vm168, %vm355
        %vm358 = vmand %vm169, %vm356
        %vm359 = vcmp.lt.s32.totalorder %v353, 16
        %vm360 = vcmp.lt.s32.totalorder %v354, 16
        %vm361 = vmand %vm357, %vm359
        %vm362 = vmand %vm358, %vm360
        %v363 = vsel %vm361, 1, 0
        %v364 = vsel %vm362, 1, 0
        %vm365 = vcmp.eq.s32.totalorder %v363, 1
        %vm366 = vcmp.eq.s32.totalorder %v364, 1
        %v367 = vsel %vm365, %v352, 0.0
        %v368 = vsel %vm366, %v349, 0.0
        %s369 = scalar_lea.vmem %s1, 16
        %v370 = vld [vmem:[%s369] sm:$0xff]
        %372 = vset.pattern.permute.xlu0 0
        %373 = vperm.xlu0 %372, %v370
        %v374 = vpop.permute.xlu0 %373
        %v376 = vlaneseq
        %v377 = vshrl.u32 %v376, 7
        %v378 = vsub.s32 0, %v377
        %v379 = vrot.slane %v367, %v378
        %v380 = vlaneseq
        %v381 = vshrl.u32 %v380, 7
        %v382 = vsub.s32 0, %v381
        %v383 = vrot.slane %v368, %v382
        %v384 = vmul.f32 %v374, %v379
        %v385 = vmul.f32 %v374, %v383
        %v386 = vadd.f32 %v341, %v384
        %v387 = vadd.f32 %v342, %v385
        %388 = vset.pattern.permute.xlu0 1
        %389 = vperm.xlu0 %388, %v370
        %v390 = vpop.permute.xlu0 %389
        %v392 = vlaneseq
        %v393 = vshrl.u32 %v392, 7
        %v394 = vsub.s32 1, %v393
        %v395 = vrot.slane %v367, %v394
        %v396 = vlaneseq
        %v397 = vshrl.u32 %v396, 7
        %v398 = vsub.s32 1, %v397
        %v399 = vrot.slane %v368, %v398
        %v400 = vmul.f32 %v390, %v395
        %v401 = vmul.f32 %v390, %v399
        %v402 = vadd.f32 %v386, %v400
        %v403 = vadd.f32 %v387, %v401
        %404 = vset.pattern.permute.xlu0 2
        %405 = vperm.xlu0 %404, %v370
        %v406 = vpop.permute.xlu0 %405
        %v408 = vlaneseq
        %v409 = vshrl.u32 %v408, 7
        %v410 = vsub.s32 2, %v409
        %v411 = vrot.slane %v367, %v410
        %v412 = vlaneseq
        %v413 = vshrl.u32 %v412, 7
        %v414 = vsub.s32 2, %v413
        %v415 = vrot.slane %v368, %v414
        %v416 = vmul.f32 %v406, %v411
        %v417 = vmul.f32 %v406, %v415
        %v418 = vadd.f32 %v402, %v416
        %v419 = vadd.f32 %v403, %v417
        %420 = vset.pattern.permute.xlu0 3
        %421 = vperm.xlu0 %420, %v370
        %v422 = vpop.permute.xlu0 %421
        %v424 = vlaneseq
        %v425 = vshrl.u32 %v424, 7
        %v426 = vsub.s32 3, %v425
        %v427 = vrot.slane %v367, %v426
        %v428 = vlaneseq
        %v429 = vshrl.u32 %v428, 7
        %v430 = vsub.s32 3, %v429
        %v431 = vrot.slane %v368, %v430
        %v432 = vmul.f32 %v422, %v427
        %v433 = vmul.f32 %v422, %v431
        %v434 = vadd.f32 %v418, %v432
        %v435 = vadd.f32 %v419, %v433
        %436 = vrot.lane.b32.xlu0 %v151, 1
        %v437 = vpop.permute.xlu0 %436
        %439 = vrot.lane.b32.xlu0 %v142, 1
        %v440 = vpop.permute.xlu0 %439
        %vm441 = vcmask 7168
        %v442 = vsel %vm441, %v440, %v437
        %v445 = vsel %vm441, %v437, %v440
        %vm446 = vcmp.ge.s32.totalorder %v146, 0
        %vm447 = vcmp.ge.s32.totalorder %v147, 0
        %vm448 = vcmp.lt.s32.totalorder %v146, 16
        %vm449 = vcmp.lt.s32.totalorder %v147, 16
        %vm450 = vmand %vm446, %vm448
        %vm451 = vmand %vm447, %vm449
        %vm452 = vmand %vm450, %vm172
        %vm453 = vmand %vm451, %vm173
        %vm454 = vmand %vm452, %vm176
        %vm455 = vmand %vm453, %vm177
        %v456 = vsel %vm454, 1, 0
        %v457 = vsel %vm455, 1, 0
        %vm458 = vcmp.eq.s32.totalorder %v456, 1
        %vm459 = vcmp.eq.s32.totalorder %v457, 1
        %v460 = vsel %vm458, %v445, 0.0
        %v461 = vsel %vm459, %v442, 0.0
        %s462 = scalar_lea.vmem %s1, 24
        %v463 = vld [vmem:[%s462] sm:$0xff]
        %465 = vset.pattern.permute.xlu0 0
        %466 = vperm.xlu0 %465, %v463
        %v467 = vpop.permute.xlu0 %466
        %v469 = vlaneseq
        %v470 = vshrl.u32 %v469, 7
        %v471 = vsub.s32 0, %v470
        %v472 = vrot.slane %v460, %v471
        %v473 = vlaneseq
        %v474 = vshrl.u32 %v473, 7
        %v475 = vsub.s32 0, %v474
        %v476 = vrot.slane %v461, %v475
        %v477 = vmul.f32 %v467, %v472
        %v478 = vmul.f32 %v467, %v476
        %v479 = vadd.f32 %v434, %v477
        %v480 = vadd.f32 %v435, %v478
        %481 = vset.pattern.permute.xlu0 1
        %482 = vperm.xlu0 %481, %v463
        %v483 = vpop.permute.xlu0 %482
        %v485 = vlaneseq
        %v486 = vshrl.u32 %v485, 7
        %v487 = vsub.s32 1, %v486
        %v488 = vrot.slane %v460, %v487
        %v489 = vlaneseq
        %v490 = vshrl.u32 %v489, 7
        %v491 = vsub.s32 1, %v490
        %v492 = vrot.slane %v461, %v491
        %v493 = vmul.f32 %v483, %v488
        %v494 = vmul.f32 %v483, %v492
        %v495 = vadd.f32 %v479, %v493
        %v496 = vadd.f32 %v480, %v494
        %497 = vset.pattern.permute.xlu0 2
        %498 = vperm.xlu0 %497, %v463
        %v499 = vpop.permute.xlu0 %498
        %v501 = vlaneseq
        %v502 = vshrl.u32 %v501, 7
        %v503 = vsub.s32 2, %v502
        %v504 = vrot.slane %v460, %v503
        %v505 = vlaneseq
        %v506 = vshrl.u32 %v505, 7
        %v507 = vsub.s32 2, %v506
        %v508 = vrot.slane %v461, %v507
        %v509 = vmul.f32 %v499, %v504
        %v510 = vmul.f32 %v499, %v508
        %v511 = vadd.f32 %v495, %v509
        %v512 = vadd.f32 %v496, %v510
        %513 = vset.pattern.permute.xlu0 3
        %514 = vperm.xlu0 %513, %v463
        %v515 = vpop.permute.xlu0 %514
        %v517 = vlaneseq
        %v518 = vshrl.u32 %v517, 7
        %v519 = vsub.s32 3, %v518
        %v520 = vrot.slane %v460, %v519
        %v521 = vlaneseq
        %v522 = vshrl.u32 %v521, 7
        %v523 = vsub.s32 3, %v522
        %v524 = vrot.slane %v461, %v523
        %v525 = vmul.f32 %v515, %v520
        %v526 = vmul.f32 %v515, %v524
        %v527 = vadd.f32 %v511, %v525
        %v528 = vadd.f32 %v512, %v526
        %vm529 = vmand %vm450, %vm262
        %vm530 = vmand %vm451, %vm263
        %vm531 = vmand %vm529, %vm266
        %vm532 = vmand %vm530, %vm267
        %v533 = vsel %vm531, 1, 0
        %v534 = vsel %vm532, 1, 0
        %vm535 = vcmp.eq.s32.totalorder %v533, 1
        %vm536 = vcmp.eq.s32.totalorder %v534, 1
        %v538 = vsel %vm535, %v142, 0.0
        %v539 = vsel %vm536, %v151, 0.0
        %s540 = scalar_lea.vmem %s1, 32
        %v541 = vld [vmem:[%s540] sm:$0xff]
        %543 = vset.pattern.permute.xlu0 0
        %544 = vperm.xlu0 %543, %v541
        %v545 = vpop.permute.xlu0 %544
        %v547 = vlaneseq
        %v548 = vshrl.u32 %v547, 7
        %v549 = vsub.s32 0, %v548
        %v550 = vrot.slane %v538, %v549
        %v551 = vlaneseq
        %v552 = vshrl.u32 %v551, 7
        %v553 = vsub.s32 0, %v552
        %v554 = vrot.slane %v539, %v553
        %v555 = vmul.f32 %v545, %v550
        %v556 = vmul.f32 %v545, %v554
        %v557 = vadd.f32 %v527, %v555
        %v558 = vadd.f32 %v528, %v556
        %559 = vset.pattern.permute.xlu0 1
        %560 = vperm.xlu0 %559, %v541
        %v561 = vpop.permute.xlu0 %560
        %v563 = vlaneseq
        %v564 = vshrl.u32 %v563, 7
        %v565 = vsub.s32 1, %v564
        %v566 = vrot.slane %v538, %v565
        %v567 = vlaneseq
        %v568 = vshrl.u32 %v567, 7
        %v569 = vsub.s32 1, %v568
        %v570 = vrot.slane %v539, %v569
        %v571 = vmul.f32 %v561, %v566
        %v572 = vmul.f32 %v561, %v570
        %v573 = vadd.f32 %v557, %v571
        %v574 = vadd.f32 %v558, %v572
        %575 = vset.pattern.permute.xlu0 2
        %576 = vperm.xlu0 %575, %v541
        %v577 = vpop.permute.xlu0 %576
        %v579 = vlaneseq
        %v580 = vshrl.u32 %v579, 7
        %v581 = vsub.s32 2, %v580
        %v582 = vrot.slane %v538, %v581
        %v583 = vlaneseq
        %v584 = vshrl.u32 %v583, 7
        %v585 = vsub.s32 2, %v584
        %v586 = vrot.slane %v539, %v585
        %v587 = vmul.f32 %v577, %v582
        %v588 = vmul.f32 %v577, %v586
        %v589 = vadd.f32 %v573, %v587
        %v590 = vadd.f32 %v574, %v588
        %591 = vset.pattern.permute.xlu0 3
        %592 = vperm.xlu0 %591, %v541
        %v593 = vpop.permute.xlu0 %592
        %v595 = vlaneseq
        %v596 = vshrl.u32 %v595, 7
        %v597 = vsub.s32 3, %v596
        %v598 = vrot.slane %v538, %v597
        %v599 = vlaneseq
        %v600 = vshrl.u32 %v599, 7
        %v601 = vsub.s32 3, %v600
        %v602 = vrot.slane %v539, %v601
        %v603 = vmul.f32 %v593, %v598
        %v604 = vmul.f32 %v593, %v602
        %v605 = vadd.f32 %v589, %v603
        %v606 = vadd.f32 %v590, %v604
        %607 = vrot.lane.b32.xlu0 %v142, 127
        %v608 = vpop.permute.xlu0 %607
        %609 = vrot.lane.b32.xlu0 %v151, 127
        %v610 = vpop.permute.xlu0 %609
        %vm611 = vcmask 1039360
        %v612 = vsel %vm611, %v608, %v610
        %v616 = vsel %vm611, %v610, %v608
        %vm617 = vmand %vm450, %vm355
        %vm618 = vmand %vm451, %vm356
        %vm619 = vmand %vm617, %vm359
        %vm620 = vmand %vm618, %vm360
        %v621 = vsel %vm619, 1, 0
        %v622 = vsel %vm620, 1, 0
        %vm623 = vcmp.eq.s32.totalorder %v621, 1
        %vm624 = vcmp.eq.s32.totalorder %v622, 1
        %v625 = vsel %vm623, %v612, 0.0
        %v626 = vsel %vm624, %v616, 0.0
        %s627 = scalar_lea.vmem %s1, 40
        %v628 = vld [vmem:[%s627] sm:$0xff]
        %630 = vset.pattern.permute.xlu0 0
        %631 = vperm.xlu0 %630, %v628
        %v632 = vpop.permute.xlu0 %631
        %v634 = vlaneseq
        %v635 = vshrl.u32 %v634, 7
        %v636 = vsub.s32 0, %v635
        %v637 = vrot.slane %v625, %v636
        %v638 = vlaneseq
        %v639 = vshrl.u32 %v638, 7
        %v640 = vsub.s32 0, %v639
        %v641 = vrot.slane %v626, %v640
        %v642 = vmul.f32 %v632, %v637
        %v643 = vmul.f32 %v632, %v641
        %v644 = vadd.f32 %v605, %v642
        %v645 = vadd.f32 %v606, %v643
        %646 = vset.pattern.permute.xlu0 1
        %647 = vperm.xlu0 %646, %v628
        %v648 = vpop.permute.xlu0 %647
        %v650 = vlaneseq
        %v651 = vshrl.u32 %v650, 7
        %v652 = vsub.s32 1, %v651
        %v653 = vrot.slane %v625, %v652
        %v654 = vlaneseq
        %v655 = vshrl.u32 %v654, 7
        %v656 = vsub.s32 1, %v655
        %v657 = vrot.slane %v626, %v656
        %v658 = vmul.f32 %v648, %v653
        %v659 = vmul.f32 %v648, %v657
        %v660 = vadd.f32 %v644, %v658
        %v661 = vadd.f32 %v645, %v659
        %662 = vset.pattern.permute.xlu0 2
        %663 = vperm.xlu0 %662, %v628
        %v664 = vpop.permute.xlu0 %663
        %v666 = vlaneseq
        %v667 = vshrl.u32 %v666, 7
        %v668 = vsub.s32 2, %v667
        %v669 = vrot.slane %v625, %v668
        %v670 = vlaneseq
        %v671 = vshrl.u32 %v670, 7
        %v672 = vsub.s32 2, %v671
        %v673 = vrot.slane %v626, %v672
        %v674 = vmul.f32 %v664, %v669
        %v675 = vmul.f32 %v664, %v673
        %v676 = vadd.f32 %v660, %v674
        %v677 = vadd.f32 %v661, %v675
        %678 = vset.pattern.permute.xlu0 3
        %679 = vperm.xlu0 %678, %v628
        %v680 = vpop.permute.xlu0 %679
        %v682 = vlaneseq
        %v683 = vshrl.u32 %v682, 7
        %v684 = vsub.s32 3, %v683
        %v685 = vrot.slane %v625, %v684
        %v686 = vlaneseq
        %v687 = vshrl.u32 %v686, 7
        %v688 = vsub.s32 3, %v687
        %v689 = vrot.slane %v626, %v688
        %v690 = vmul.f32 %v680, %v685
        %v691 = vmul.f32 %v680, %v689
        %v692 = vadd.f32 %v676, %v690
        %v693 = vadd.f32 %v677, %v691
        %694 = vrot.lane.b32.xlu0 %v142, 113
        %v695 = vpop.permute.xlu0 %694
        %696 = vrot.lane.b32.xlu0 %v151, 113
        %v697 = vpop.permute.xlu0 %696
        %vm698 = vcmask 924672
        %v699 = vsel %vm698, %v695, %v697
        %v703 = vsel %vm698, %v697, %v695
        %v704 = vadd.s32 %v146, 1
        %v705 = vadd.s32 %v147, 1
        %vm706 = vcmp.ge.s32.totalorder %v704, 0
        %vm707 = vcmp.ge.s32.totalorder %v705, 0
        %vm708 = vcmp.lt.s32.totalorder %v704, 16
        %vm709 = vcmp.lt.s32.totalorder %v705, 16
        %vm710 = vmand %vm706, %vm708
        %vm711 = vmand %vm707, %vm709
        %vm712 = vmand %vm710, %vm172
        %vm713 = vmand %vm711, %vm173
        %vm714 = vmand %vm712, %vm176
        %vm715 = vmand %vm713, %vm177
        %v716 = vsel %vm714, 1, 0
        %v717 = vsel %vm715, 1, 0
        %vm718 = vcmp.eq.s32.totalorder %v716, 1
        %vm719 = vcmp.eq.s32.totalorder %v717, 1
        %v720 = vsel %vm718, %v699, 0.0
        %v721 = vsel %vm719, %v703, 0.0
        %s722 = scalar_lea.vmem %s1, 48
        %v723 = vld [vmem:[%s722] sm:$0xff]
        %725 = vset.pattern.permute.xlu0 0
        %726 = vperm.xlu0 %725, %v723
        %v727 = vpop.permute.xlu0 %726
        %v729 = vlaneseq
        %v730 = vshrl.u32 %v729, 7
        %v731 = vsub.s32 0, %v730
        %v732 = vrot.slane %v720, %v731
        %v733 = vlaneseq
        %v734 = vshrl.u32 %v733, 7
        %v735 = vsub.s32 0, %v734
        %v736 = vrot.slane %v721, %v735
        %v737 = vmul.f32 %v727, %v732
        %v738 = vmul.f32 %v727, %v736
        %v739 = vadd.f32 %v692, %v737
        %v740 = vadd.f32 %v693, %v738
        %741 = vset.pattern.permute.xlu0 1
        %742 = vperm.xlu0 %741, %v723
        %v743 = vpop.permute.xlu0 %742
        %v745 = vlaneseq
        %v746 = vshrl.u32 %v745, 7
        %v747 = vsub.s32 1, %v746
        %v748 = vrot.slane %v720, %v747
        %v749 = vlaneseq
        %v750 = vshrl.u32 %v749, 7
        %v751 = vsub.s32 1, %v750
        %v752 = vrot.slane %v721, %v751
        %v753 = vmul.f32 %v743, %v748
        %v754 = vmul.f32 %v743, %v752
        %v755 = vadd.f32 %v739, %v753
        %v756 = vadd.f32 %v740, %v754
        %757 = vset.pattern.permute.xlu0 2
        %758 = vperm.xlu0 %757, %v723
        %v759 = vpop.permute.xlu0 %758
        %v761 = vlaneseq
        %v762 = vshrl.u32 %v761, 7
        %v763 = vsub.s32 2, %v762
        %v764 = vrot.slane %v720, %v763
        %v765 = vlaneseq
        %v766 = vshrl.u32 %v765, 7
        %v767 = vsub.s32 2, %v766
        %v768 = vrot.slane %v721, %v767
        %v769 = vmul.f32 %v759, %v764
        %v770 = vmul.f32 %v759, %v768
        %v771 = vadd.f32 %v755, %v769
        %v772 = vadd.f32 %v756, %v770
        %773 = vset.pattern.permute.xlu0 3
        %774 = vperm.xlu0 %773, %v723
        %v775 = vpop.permute.xlu0 %774
        %v777 = vlaneseq
        %v778 = vshrl.u32 %v777, 7
        %v779 = vsub.s32 3, %v778
        %v780 = vrot.slane %v720, %v779
        %v781 = vlaneseq
        %v782 = vshrl.u32 %v781, 7
        %v783 = vsub.s32 3, %v782
        %v784 = vrot.slane %v721, %v783
        %v785 = vmul.f32 %v775, %v780
        %v786 = vmul.f32 %v775, %v784
        %v787 = vadd.f32 %v771, %v785
        %v788 = vadd.f32 %v772, %v786
        %789 = vrot.lane.b32.xlu0 %v142, 112
        %v790 = vpop.permute.xlu0 %789
        %791 = vrot.lane.b32.xlu0 %v151, 112
        %v792 = vpop.permute.xlu0 %791
        %vm793 = vcmask 916480
        %v794 = vsel %vm793, %v790, %v792
        %v798 = vsel %vm793, %v792, %v790
        %vm799 = vmand %vm710, %vm262
        %vm800 = vmand %vm711, %vm263
        %vm801 = vmand %vm799, %vm266
        %vm802 = vmand %vm800, %vm267
        %v803 = vsel %vm801, 1, 0
        %v804 = vsel %vm802, 1, 0
        %vm805 = vcmp.eq.s32.totalorder %v803, 1
        %vm806 = vcmp.eq.s32.totalorder %v804, 1
        %v807 = vsel %vm805, %v794, 0.0
        %v808 = vsel %vm806, %v798, 0.0
        %s809 = scalar_lea.vmem %s1, 56
        %v810 = vld [vmem:[%s809] sm:$0xff]
        %812 = vset.pattern.permute.xlu0 0
        %813 = vperm.xlu0 %812, %v810
        %v814 = vpop.permute.xlu0 %813
        %v816 = vlaneseq
        %v817 = vshrl.u32 %v816, 7
        %v818 = vsub.s32 0, %v817
        %v819 = vrot.slane %v807, %v818
        %v820 = vlaneseq
        %v821 = vshrl.u32 %v820, 7
        %v822 = vsub.s32 0, %v821
        %v823 = vrot.slane %v808, %v822
        %v824 = vmul.f32 %v814, %v819
        %v825 = vmul.f32 %v814, %v823
        %v826 = vadd.f32 %v787, %v824
        %v827 = vadd.f32 %v788, %v825
        %828 = vset.pattern.permute.xlu0 1
        %829 = vperm.xlu0 %828, %v810
        %v830 = vpop.permute.xlu0 %829
        %v832 = vlaneseq
        %v833 = vshrl.u32 %v832, 7
        %v834 = vsub.s32 1, %v833
        %v835 = vrot.slane %v807, %v834
        %v836 = vlaneseq
        %v837 = vshrl.u32 %v836, 7
        %v838 = vsub.s32 1, %v837
        %v839 = vrot.slane %v808, %v838
        %v840 = vmul.f32 %v830, %v835
        %v841 = vmul.f32 %v830, %v839
        %v842 = vadd.f32 %v826, %v840
        %v843 = vadd.f32 %v827, %v841
        %844 = vset.pattern.permute.xlu0 2
        %845 = vperm.xlu0 %844, %v810
        %v846 = vpop.permute.xlu0 %845
        %v848 = vlaneseq
        %v849 = vshrl.u32 %v848, 7
        %v850 = vsub.s32 2, %v849
        %v851 = vrot.slane %v807, %v850
        %v852 = vlaneseq
        %v853 = vshrl.u32 %v852, 7
        %v854 = vsub.s32 2, %v853
        %v855 = vrot.slane %v808, %v854
        %v856 = vmul.f32 %v846, %v851
        %v857 = vmul.f32 %v846, %v855
        %v858 = vadd.f32 %v842, %v856
        %v859 = vadd.f32 %v843, %v857
        %860 = vset.pattern.permute.xlu0 3
        %861 = vperm.xlu0 %860, %v810
        %v862 = vpop.permute.xlu0 %861
        %v864 = vlaneseq
        %v865 = vshrl.u32 %v864, 7
        %v866 = vsub.s32 3, %v865
        %v867 = vrot.slane %v807, %v866
        %v868 = vlaneseq
        %v869 = vshrl.u32 %v868, 7
        %v870 = vsub.s32 3, %v869
        %v871 = vrot.slane %v808, %v870
        %v872 = vmul.f32 %v862, %v867
        %v873 = vmul.f32 %v862, %v871
        %v874 = vadd.f32 %v858, %v872
        %v875 = vadd.f32 %v859, %v873
        %876 = vrot.lane.b32.xlu0 %v142, 111
        %v877 = vpop.permute.xlu0 %876
        %878 = vrot.lane.b32.xlu0 %v151, 111
        %v879 = vpop.permute.xlu0 %878
        %vm880 = vcmask 908288
        %v881 = vsel %vm880, %v877, %v879
        %v885 = vsel %vm880, %v879, %v877
        %vm886 = vmand %vm710, %vm355
        %vm887 = vmand %vm711, %vm356
        %vm888 = vmand %vm886, %vm359
        %vm889 = vmand %vm887, %vm360
        %v890 = vsel %vm888, 1, 0
        %v891 = vsel %vm889, 1, 0
        %vm892 = vcmp.eq.s32.totalorder %v890, 1
        %vm893 = vcmp.eq.s32.totalorder %v891, 1
        %v894 = vsel %vm892, %v881, 0.0
        %v895 = vsel %vm893, %v885, 0.0
        %s896 = scalar_lea.vmem %s1, 64
        %v897 = vld [vmem:[%s896] sm:$0xff]
        %899 = vset.pattern.permute.xlu0 0
        %900 = vperm.xlu0 %899, %v897
        %v901 = vpop.permute.xlu0 %900
        %v903 = vlaneseq
        %v904 = vshrl.u32 %v903, 7
        %v905 = vsub.s32 0, %v904
        %v906 = vrot.slane %v894, %v905
        %v907 = vlaneseq
        %v908 = vshrl.u32 %v907, 7
        %v909 = vsub.s32 0, %v908
        %v910 = vrot.slane %v895, %v909
        %v911 = vmul.f32 %v901, %v906
        %v912 = vmul.f32 %v901, %v910
        %v913 = vadd.f32 %v874, %v911
        %v914 = vadd.f32 %v875, %v912
        %915 = vset.pattern.permute.xlu0 1
        %916 = vperm.xlu0 %915, %v897
        %v917 = vpop.permute.xlu0 %916
        %v919 = vlaneseq
        %v920 = vshrl.u32 %v919, 7
        %v921 = vsub.s32 1, %v920
        %v922 = vrot.slane %v894, %v921
        %v923 = vlaneseq
        %v924 = vshrl.u32 %v923, 7
        %v925 = vsub.s32 1, %v924
        %v926 = vrot.slane %v895, %v925
        %v927 = vmul.f32 %v917, %v922
        %v928 = vmul.f32 %v917, %v926
        %v929 = vadd.f32 %v913, %v927
        %v930 = vadd.f32 %v914, %v928
        %931 = vset.pattern.permute.xlu0 2
        %932 = vperm.xlu0 %931, %v897
        %v933 = vpop.permute.xlu0 %932
        %v935 = vlaneseq
        %v936 = vshrl.u32 %v935, 7
        %v937 = vsub.s32 2, %v936
        %v938 = vrot.slane %v894, %v937
        %v939 = vlaneseq
        %v940 = vshrl.u32 %v939, 7
        %v941 = vsub.s32 2, %v940
        %v942 = vrot.slane %v895, %v941
        %v943 = vmul.f32 %v933, %v938
        %v944 = vmul.f32 %v933, %v942
        %v945 = vadd.f32 %v929, %v943
        %v946 = vadd.f32 %v930, %v944
        %947 = vset.pattern.permute.xlu0 3
        %948 = vperm.xlu0 %947, %v897
        %v949 = vpop.permute.xlu0 %948
        %v951 = vlaneseq
        %v952 = vshrl.u32 %v951, 7
        %v953 = vsub.s32 3, %v952
        %v954 = vrot.slane %v894, %v953
        %v955 = vlaneseq
        %v956 = vshrl.u32 %v955, 7
        %v957 = vsub.s32 3, %v956
        %v958 = vrot.slane %v895, %v957
        %v959 = vmul.f32 %v949, %v954
        %v960 = vmul.f32 %v949, %v958
        %v961 = vadd.f32 %v945, %v959
        %v962 = vadd.f32 %v946, %v960
        %963 = vst [vmem:[%s136] sm:$0xff] %v961
        %964 = vst [vmem:[%s136 + $0x8] sm:$0xff] %v962
        %s965 = sand.u32 %s71, 1
        %s966 = scalar_lea.sflag [#allocation3], %s965
        %s967 = sand.u32 %s71, 1
        %s968 = smul.addr %s967, 16
        %s969 = scalar_lea.vmem [#allocation2], %s968
        // Predicated region
        $region29: #{tpu_custom_call.1} parent=27 // pred_check
          %p970 = pneg %p81
        $region30: #{tpu_custom_call.1} parent=27 // pred_check_branch
          %972 = sbr.rel (%p970) target = $region32
        $region31: #{tpu_custom_call.1} parent=27 // pred_region
          %s974 = ssub.s32 256, 256
          %975 = vsyncadd %s966, %s974
          %s976 = smul.addr %s16, 2
          %s977 = smul.addr %s976, 128
          %s978 = scalar_lea.hbm %s2, %s977
          %s980 = sshll.u32 %s969, 4
          %s981 = int_to_ptr.vmem [resolvable:$true] %s980
          %983 = dma.vmem_to_hbm [thread:$0]  %s981, 256, %s978, %s966
        $region32: #{tpu_custom_call.1} parent=27 // pred_fallthru
          _
      $region28: #{tpu_custom_call.1} parent=5 // pred_fallthru
        _
      %p984 = scmp.le.s32.totalorder 2, %s11
      // Predicated region
      $region33: #{tpu_custom_call.1} parent=5 // pred_check
        %p985 = pneg %p984
      $region34: #{tpu_custom_call.1} parent=5 // pred_check_branch
        %987 = sbr.rel (%p985) target = $region36
      $region35: #{tpu_custom_call.1} parent=5 // pred_region
        %s988 = ssub.s32 %s11, 2
        // Predicated region
        $region37: #{tpu_custom_call.1} parent=35 // pred_check
          %p989 = pneg %p87
        $region38: #{tpu_custom_call.1} parent=35 // pred_check_branch
          %991 = sbr.rel (%p989) target = $region40
        $region39: #{tpu_custom_call.1} parent=35 // pred_region
          %s992 = sand.u32 %s72, 1
          %s993 = scalar_lea.sflag [#allocation3], %s992
          %s994 = sand.u32 %s72, 1
          %s995 = smul.addr %s994, 16
          %s996 = scalar_lea.vmem [#allocation2], %s995
          %997 = dma.done %s993, 256
        $region40: #{tpu_custom_call.1} parent=35 // pred_fallthru
          _
      $region36: #{tpu_custom_call.1} parent=5 // pred_fallthru
        _
    $region6: #{tpu_custom_call.1} parent=1 // loop_footer
      %s15 = sadd.s32 1, %s11
    $region7: #{tpu_custom_call.1} parent=1 // loop_footer_branch
      %10 = sbr.rel target = $region3
    $region8: #{tpu_custom_call.1} parent=1 // loop_exit
      _
    %998 = vsyncpa [#allocation3], 1
    %s999 = scalar_lea.sflag [#allocation3], 1
    %1000 = vsyncpa %s999, 1

</llo_original>
